<compile_context>
chip_gen: v7x
topology: tpu7x:2x2x1
jax: 0.10.0
libtpu: 0.0.40
codegen_flags: <defaults>
</compile_context>

<pallas_src>
import functools

import jax
import jax.numpy as jnp
import numpy as np
from jax import lax
from jax.experimental import pallas as pl
from jax.experimental.pallas import tpu as pltpu


def _cross_attn_kernel(heads, dim_head, scale, kv_chunks,
                       x_ref, m_ref, wq_ref, wkv_ref, wo_ref, bo_ref,
                       o_ref, kv_ref, slab_ref):
    """One grid step = (one batch element, one query tile); all heads fused."""
    inner_dim = heads * dim_head
    qi = pl.program_id(1)

    # ---- K/V projection: once per batch element, cached in bf16 VMEM scratch. ----
    # Correct because the qi axis is "arbitrary": qi == 0 is always the first step
    # seen for a new batch element on whichever core owns it.
    @pl.when(qi == 0)
    def _():
        for c0, csz in kv_chunks:              # static chunking bounds the f32 temp
            m_c = m_ref[0, c0:c0 + csz, :]      # (csz, dim) bf16
            kv_ref[c0:c0 + csz, :] = jnp.dot(
                m_c, wkv_ref[...], preferred_element_type=jnp.float32
            ).astype(kv_ref.dtype)

    # ---- Q projection: bf16 MXU operands, f32 accumulator, exact f32 scaling. ----
    q = jnp.dot(x_ref[0], wq_ref[...], preferred_element_type=jnp.float32)
    q = q * jnp.float32(scale)                                     # (tq, inner) f32
    tq = q.shape[0]

    # ---- Per-head attention with flash-style online softmax over kv chunks. ----
    for h in range(heads):          # static trip count; temps die at the slab store
        lo = h * dim_head
        q_h = q[:, lo:lo + dim_head].astype(jnp.bfloat16)          # (tq, dh)

        m_i = jnp.full((tq, 1), -jnp.inf, jnp.float32)
        l_i = jnp.zeros((tq, 1), jnp.float32)
        acc = jnp.zeros((tq, dim_head), jnp.float32)

        for c0, csz in kv_chunks:
            k_c = kv_ref[c0:c0 + csz, lo:lo + dim_head]                          # (csz, dh) bf16
            v_c = kv_ref[c0:c0 + csz, inner_dim + lo:inner_dim + lo + dim_head]  # (csz, dh) bf16

            # Contract the last dims directly -> no transposed copy of k.
            s = lax.dot_general(q_h, k_c, (((1,), (1,)), ((), ())),
                                preferred_element_type=jnp.float32)              # (tq, csz)

            m_new = jnp.maximum(m_i, jnp.max(s, axis=-1, keepdims=True))
            alpha = jnp.exp(m_i - m_new)
            p = jnp.exp(s - m_new)
            l_i = alpha * l_i + jnp.sum(p, axis=-1, keepdims=True)
            acc = alpha * acc + jnp.dot(p.astype(jnp.bfloat16), v_c,
                                        preferred_element_type=jnp.float32)
            m_i = m_new

        # Softmax denominator via the EUP approximate reciprocal (free slot).
        slab_ref[:, lo:lo + dim_head] = (
            acc * pl.reciprocal(l_i, approx=True)).astype(slab_ref.dtype)

    # ---- Output projection (single matmul) + bias; one store per tile. ----
    o_ref[0] = (jnp.dot(slab_ref[...], wo_ref[...],
                        preferred_element_type=jnp.float32)
                + bo_ref[...])


def prepare_cross_attention_params(wq, wk, wv, wo, bo):
    """One-time weight prep, hoisted out of the per-call path:
    fuse the K/V projections into a single operand and cast MXU operands to bf16."""
    wkv = jnp.concatenate([wk, wv], axis=-1)          # (dim, 2*inner)
    return dict(
        wq=wq.astype(jnp.bfloat16),
        wkv=wkv.astype(jnp.bfloat16),
        wo=wo.astype(jnp.bfloat16),
        bo=bo.astype(jnp.float32),
    )


def cross_attention_pallas(x, m, params, scale, *, heads, dim_head,
                           q_tile=512, kv_tile=512):
    """x: (b, n, dim), m: (b, nm, dim).  params from prepare_cross_attention_params
    (weights in y = x @ W layout). Returns f32 (b, n, dim)."""
    b, n, dim = x.shape
    nm = m.shape[1]
    inner_dim = heads * dim_head

    wq, wkv, wo, bo = params["wq"], params["wkv"], params["wo"], params["bo"]

    # bf16 activations -> half the DMA bytes and native MXU operand width.
    # (Callers may pass bf16 x/m directly to skip this cast.)
    x_bf = x.astype(jnp.bfloat16)
    m_bf = m.astype(jnp.bfloat16)

    tq = n if n <= q_tile else q_tile
    n_q_tiles = pl.cdiv(n, tq)

    # Static kv chunking for the in-kernel online softmax.
    tkv = nm if nm <= kv_tile else kv_tile
    kv_chunks = tuple((c * tkv, min(tkv, nm - c * tkv))
                      for c in range(pl.cdiv(nm, tkv)))

    kernel = functools.partial(_cross_attn_kernel, heads, dim_head, float(scale),
                               kv_chunks)

    # VMEM budget derived from the actual tile footprint (with 2x headroom),
    # clamped to stay within v7x's 64 MiB per-core VMEM.
    footprint = (
        2 * tq * dim * (2 + 4)                                   # x tile (bf16) + out tile (f32), 2 bufs
        + 2 * nm * dim * 2                                       # m (worst case: double buffered)
        + 2 * (dim * inner_dim + dim * 2 * inner_dim + inner_dim * dim) * 2  # weights
        + 2 * dim * 4                                            # bias
        + nm * 2 * inner_dim * 2                                 # kv scratch (bf16)
        + tq * inner_dim * 2                                     # head-output slab (bf16)
        + tq * inner_dim * 4                                     # q accumulator (f32)
        + 4 * tq * tkv * 4                                       # score tile + exp temporaries
    )
    vmem_limit = int(min(max(2 * footprint, 32 * 2**20), 64 * 2**20))

    def build(single_buffer):
        def const_spec(shape):
            idx = lambda bi, qi, _r=len(shape): (0,) * _r
            if single_buffer:
                return pl.BlockSpec(shape, idx, pipeline_mode=pl.Buffered(1))
            return pl.BlockSpec(shape, idx)

        m_idx = lambda bi, qi: (bi, 0, 0)
        if single_buffer:
            m_spec = pl.BlockSpec((1, nm, dim), m_idx, pipeline_mode=pl.Buffered(1))
        else:
            m_spec = pl.BlockSpec((1, nm, dim), m_idx)

        return pl.pallas_call(
            kernel,
            out_shape=jax.ShapeDtypeStruct((b, n, dim), jnp.float32),
            grid_spec=pltpu.PrefetchScalarGridSpec(
                num_scalar_prefetch=0,
                grid=(b, n_q_tiles),
                in_specs=[
                    pl.BlockSpec((1, tq, dim), lambda bi, qi: (bi, qi, 0)),  # x tile
                    m_spec,                                                  # m (full kv seq)
                    const_spec((dim, inner_dim)),                            # wq
                    const_spec((dim, 2 * inner_dim)),                        # wkv (fused K/V)
                    const_spec((inner_dim, dim)),                            # wo
                    const_spec((1, dim)),                                    # bias
                ],
                out_specs=pl.BlockSpec((1, tq, dim), lambda bi, qi: (bi, qi, 0)),
                scratch_shapes=[
                    pltpu.VMEM((nm, 2 * inner_dim), jnp.bfloat16),  # cached K/V projection
                    pltpu.VMEM((tq, inner_dim), jnp.bfloat16),      # per-tile head-output slab
                ],
            ),
            compiler_params=pltpu.CompilerParams(
                # qi must be "arbitrary": the kv cache is rebuilt only at qi == 0,
                # which requires in-order qi iteration within each batch element.
                dimension_semantics=("parallel", "arbitrary"),
                vmem_limit_bytes=vmem_limit,
            ),
        )

    try:
        out = build(single_buffer=True)(x_bf, m_bf, wq, wkv, wo, bo)
        return jax.block_until_ready(out)
    except Exception:
        # Fallback if this Pallas version rejects pipeline_mode=pl.Buffered(1);
        # correctness is unaffected, only VMEM double-buffering differs.
        out = build(single_buffer=False)(x_bf, m_bf, wq, wkv, wo, bo)
        return jax.block_until_ready(out)


def cross_attention_ref(x, m, wq, wk, wv, wo, bo, scale, *, heads, dim_head):
    """Pure-JAX f32 reference mirroring the PyTorch forward (mask=None, eval mode)."""
    b, n, _ = x.shape
    nm = m.shape[1]
    q = (x @ wq).reshape(b, n, heads, dim_head).transpose(0, 2, 1, 3)
    k = (m @ wk).reshape(b, nm, heads, dim_head).transpose(0, 2, 1, 3)
    v = (m @ wv).reshape(b, nm, heads, dim_head).transpose(0, 2, 1, 3)
    dots = jnp.einsum('bhid,bhjd->bhij', q, k) * scale
    attn = jax.nn.softmax(dots, axis=-1)
    out = jnp.einsum('bhij,bhjd->bhid', attn, v)
    out = out.transpose(0, 2, 1, 3).reshape(b, n, heads * dim_head)
    return out @ wo + bo


if __name__ == "__main__":
    # Module hyper-params (small, consistent with the forward).
    dim = 32
    heads = 4
    dim_head = 8
    inner_dim = heads * dim_head
    scale = dim ** (-0.5)          # PyTorch module scales by dim**-0.5 (not dim_head)

    b, n, nm = 2, 8, 8

    key = jax.random.PRNGKey(0)
    kx, km, kq, kk, kv_, ko, kb = jax.random.split(key, 7)

    x = jax.random.normal(kx, (b, n, dim), dtype=jnp.float32)
    m = jax.random.normal(km, (b, nm, dim), dtype=jnp.float32)

    # PyTorch Linear stores (out, in) and does x @ W^T; generate (in, out) = W^T directly.
    wq = jax.random.normal(kq, (dim, inner_dim), dtype=jnp.float32) * 0.05
    wk = jax.random.normal(kk, (dim, inner_dim), dtype=jnp.float32) * 0.05
    wv = jax.random.normal(kv_, (dim, inner_dim), dtype=jnp.float32) * 0.05
    wo = jax.random.normal(ko, (inner_dim, dim), dtype=jnp.float32) * 0.05
    bo = jax.random.normal(kb, (1, dim), dtype=jnp.float32) * 0.05

    params = prepare_cross_attention_params(wq, wk, wv, wo, bo)
    out = cross_attention_pallas(x, m, params, scale, heads=heads, dim_head=dim_head)
    out = jax.block_until_ready(out)

    ref = cross_attention_ref(x, m, wq, wk, wv, wo, bo, scale,
                              heads=heads, dim_head=dim_head)
    # Tolerance accommodates bf16 MXU operands (f32 accumulation) and the
    # EUP approximate-reciprocal softmax denominator.
    np.testing.assert_allclose(np.asarray(out, dtype=np.float32), np.asarray(ref),
                               rtol=2e-2, atol=2e-2)

    print("KERNEL_OK")
</pallas_src>

<mosaic_0001>
module attributes {stable_mosaic.version = 11 : i64} {
  func.func @_cross_attn_kernel(%arg0: i32, %arg1: i32, %arg2: memref<1x8x32xbf16, #tpu.memory_space<vmem>>, %arg3: memref<1x8x32xbf16, #tpu.memory_space<vmem>>, %arg4: memref<32x32xbf16, #tpu.memory_space<vmem>>, %arg5: memref<32x64xbf16, #tpu.memory_space<vmem>>, %arg6: memref<32x32xbf16, #tpu.memory_space<vmem>>, %arg7: memref<1x32xf32, #tpu.memory_space<vmem>>, %arg8: memref<1x8x32xf32, #tpu.memory_space<vmem>>, %arg9: memref<8x64xbf16, #tpu.memory_space<vmem>>, %arg10: memref<8x32xbf16, #tpu.memory_space<vmem>>) attributes {dimension_semantics = [#tpu.dimension_semantics<parallel>, #tpu.dimension_semantics<arbitrary>], iteration_bounds = array<i64: 2, 1>, scalar_prefetch = 0 : i64, scratch_operands = 2 : i64, tpu.core_type = #tpu.core_type<tc>, window_params = [{transform_indices = @transform_0, window_bounds = array<i64: 1, 8, 32>}, {pipeline_mode = #tpu.pipeline_mode<synchronous>, transform_indices = @transform_1, window_bounds = array<i64: 1, 8, 32>}, {pipeline_mode = #tpu.pipeline_mode<synchronous>, transform_indices = @transform_2, window_bounds = array<i64: 32, 32>}, {pipeline_mode = #tpu.pipeline_mode<synchronous>, transform_indices = @transform_3, window_bounds = array<i64: 32, 64>}, {pipeline_mode = #tpu.pipeline_mode<synchronous>, transform_indices = @transform_4, window_bounds = array<i64: 32, 32>}, {pipeline_mode = #tpu.pipeline_mode<synchronous>, transform_indices = @transform_5, window_bounds = array<i64: 1, 32>}, {transform_indices = @transform_6, window_bounds = array<i64: 1, 8, 32>}]} {
    %c0_i32 = arith.constant 0 : i32
    %0 = arith.cmpi eq, %arg1, %c0_i32 : i32
    %1 = arith.extui %0 : i1 to i32
    %c0_i32_0 = arith.constant 0 : i32
    %2 = arith.cmpi ne, %1, %c0_i32_0 : i32
    scf.if %2 {
      %c0_61 = arith.constant 0 : index
      %c0_62 = arith.constant 0 : index
      %c0_63 = arith.constant 0 : index
      %138 = vector.load %arg3[%c0_61, %c0_62, %c0_63] : memref<1x8x32xbf16, #tpu.memory_space<vmem>>, vector<1x8x32xbf16>
      %139 = vector.shape_cast %138 : vector<1x8x32xbf16> to vector<8x32xbf16>
      %c0_64 = arith.constant 0 : index
      %c0_65 = arith.constant 0 : index
      %140 = vector.load %arg5[%c0_64, %c0_65] : memref<32x64xbf16, #tpu.memory_space<vmem>>, vector<32x64xbf16>
      %cst_66 = arith.constant dense<0.000000e+00> : vector<8x64xf32>
      %141 = tpu.matmul %139, %140, %cst_66 {dimension_numbers = #tpu.dot_dimension_numbers<[1], [0], [0], [1], [0, 0, 1, 1], [], []>} : vector<8x32xbf16>, vector<32x64xbf16>, vector<8x64xf32> -> vector<8x64xf32>
      %142 = arith.truncf %141 : vector<8x64xf32> to vector<8x64xbf16>
      %c0_67 = arith.constant 0 : index
      %c0_68 = arith.constant 0 : index
      %143 = vector.load %arg9[%c0_67, %c0_68] : memref<8x64xbf16, #tpu.memory_space<vmem>>, vector<8x64xbf16>
      tpu.vector_store %arg9[%c0_67, %c0_68], %142 {strides = array<i32>} : memref<8x64xbf16, #tpu.memory_space<vmem>>, vector<8x64xbf16>,
    } else {
    }
    %c0 = arith.constant 0 : index
    %c0_1 = arith.constant 0 : index
    %c0_2 = arith.constant 0 : index
    %3 = vector.load %arg2[%c0, %c0_1, %c0_2] : memref<1x8x32xbf16, #tpu.memory_space<vmem>>, vector<1x8x32xbf16>
    %4 = vector.shape_cast %3 : vector<1x8x32xbf16> to vector<8x32xbf16>
    %c0_3 = arith.constant 0 : index
    %c0_4 = arith.constant 0 : index
    %5 = vector.load %arg4[%c0_3, %c0_4] : memref<32x32xbf16, #tpu.memory_space<vmem>>, vector<32x32xbf16>
    %cst = arith.constant dense<0.000000e+00> : vector<8x32xf32>
    %6 = tpu.matmul %4, %5, %cst {dimension_numbers = #tpu.dot_dimension_numbers<[1], [0], [0], [1], [0, 0, 1, 1], [], []>} : vector<8x32xbf16>, vector<32x32xbf16>, vector<8x32xf32> -> vector<8x32xf32>
    %cst_5 = arith.constant 0.176776692 : f32
    %7 = vector.broadcast %cst_5 : f32 to vector<8x32xf32>
    %8 = arith.mulf %6, %7 : vector<8x32xf32>
    %9 = vector.extract_strided_slice %8 {offsets = [0, 0], sizes = [8, 8], strides = [1, 1]} : vector<8x32xf32> to vector<8x8xf32>
    %10 = arith.truncf %9 : vector<8x8xf32> to vector<8x8xbf16>
    %cst_6 = arith.constant 0xFF800000 : f32
    %11 = vector.broadcast %cst_6 : f32 to vector<8x1xf32>
    %cst_7 = arith.constant 0.000000e+00 : f32
    %12 = vector.broadcast %cst_7 : f32 to vector<8x1xf32>
    %cst_8 = arith.constant 0.000000e+00 : f32
    %13 = vector.broadcast %cst_8 : f32 to vector<8x8xf32>
    %c0_9 = arith.constant 0 : index
    %c0_10 = arith.constant 0 : index
    %14 = vector.load %arg9[%c0_9, %c0_10] : memref<8x64xbf16, #tpu.memory_space<vmem>>, vector<8x8xbf16>
    %c0_11 = arith.constant 0 : index
    %c32 = arith.constant 32 : index
    %15 = vector.load %arg9[%c0_11, %c32] : memref<8x64xbf16, #tpu.memory_space<vmem>>, vector<8x8xbf16>
    %cst_12 = arith.constant dense<0.000000e+00> : vector<8x8xf32>
    %16 = tpu.matmul %10, %14, %cst_12 {dimension_numbers = #tpu.dot_dimension_numbers<[1], [1], [0], [0], [0, 0, 1, 0], [], []>} : vector<8x8xbf16>, vector<8x8xbf16>, vector<8x8xf32> -> vector<8x8xf32>
    %cst_13 = arith.constant dense<0xFF800000> : vector<8xf32>
    %17 = vector.multi_reduction <maximumf>, %16, %cst_13 [1] : vector<8x8xf32> to vector<8xf32>
    %18 = vector.shape_cast %17 : vector<8xf32> to vector<8x1xf32>
    %19 = arith.maximumf %11, %18 : vector<8x1xf32>
    %20 = arith.subf %11, %19 : vector<8x1xf32>
    %21 = math.exp %20 : vector<8x1xf32>
    %22 = vector.broadcast %19 : vector<8x1xf32> to vector<8x8xf32>
    %23 = arith.subf %16, %22 : vector<8x8xf32>
    %24 = math.exp %23 : vector<8x8xf32>
    %25 = arith.mulf %21, %12 : vector<8x1xf32>
    %cst_14 = arith.constant dense<0.000000e+00> : vector<8xf32>
    %26 = vector.multi_reduction <add>, %24, %cst_14 [1] : vector<8x8xf32> to vector<8xf32>
    %27 = vector.shape_cast %26 : vector<8xf32> to vector<8x1xf32>
    %28 = arith.addf %25, %27 : vector<8x1xf32>
    %29 = vector.broadcast %21 : vector<8x1xf32> to vector<8x8xf32>
    %30 = arith.mulf %29, %13 : vector<8x8xf32>
    %31 = arith.truncf %24 : vector<8x8xf32> to vector<8x8xbf16>
    %cst_15 = arith.constant dense<0.000000e+00> : vector<8x8xf32>
    %32 = tpu.matmul %31, %15, %cst_15 {dimension_numbers = #tpu.dot_dimension_numbers<[1], [0], [0], [1], [0, 0, 1, 1], [], []>} : vector<8x8xbf16>, vector<8x8xbf16>, vector<8x8xf32> -> vector<8x8xf32>
    %33 = arith.addf %30, %32 : vector<8x8xf32>
    %34 = tpu.reciprocal %28 {approx = true} : vector<8x1xf32> -> vector<8x1xf32>
    %35 = vector.broadcast %34 : vector<8x1xf32> to vector<8x8xf32>
    %36 = arith.mulf %33, %35 : vector<8x8xf32>
    %37 = arith.truncf %36 : vector<8x8xf32> to vector<8x8xbf16>
    %c0_16 = arith.constant 0 : index
    %c0_17 = arith.constant 0 : index
    %38 = vector.load %arg10[%c0_16, %c0_17] : memref<8x32xbf16, #tpu.memory_space<vmem>>, vector<8x8xbf16>
    tpu.vector_store %arg10[%c0_16, %c0_17], %37 {strides = array<i32>} : memref<8x32xbf16, #tpu.memory_space<vmem>>, vector<8x8xbf16>,
    %39 = vector.extract_strided_slice %8 {offsets = [0, 8], sizes = [8, 8], strides = [1, 1]} : vector<8x32xf32> to vector<8x8xf32>
    %40 = arith.truncf %39 : vector<8x8xf32> to vector<8x8xbf16>
    %cst_18 = arith.constant 0xFF800000 : f32
    %41 = vector.broadcast %cst_18 : f32 to vector<8x1xf32>
    %cst_19 = arith.constant 0.000000e+00 : f32
    %42 = vector.broadcast %cst_19 : f32 to vector<8x1xf32>
    %cst_20 = arith.constant 0.000000e+00 : f32
    %43 = vector.broadcast %cst_20 : f32 to vector<8x8xf32>
    %c0_21 = arith.constant 0 : index
    %c8 = arith.constant 8 : index
    %44 = vector.load %arg9[%c0_21, %c8] : memref<8x64xbf16, #tpu.memory_space<vmem>>, vector<8x8xbf16>
    %c0_22 = arith.constant 0 : index
    %c40 = arith.constant 40 : index
    %45 = vector.load %arg9[%c0_22, %c40] : memref<8x64xbf16, #tpu.memory_space<vmem>>, vector<8x8xbf16>
    %cst_23 = arith.constant dense<0.000000e+00> : vector<8x8xf32>
    %46 = tpu.matmul %40, %44, %cst_23 {dimension_numbers = #tpu.dot_dimension_numbers<[1], [1], [0], [0], [0, 0, 1, 0], [], []>} : vector<8x8xbf16>, vector<8x8xbf16>, vector<8x8xf32> -> vector<8x8xf32>
    %cst_24 = arith.constant dense<0xFF800000> : vector<8xf32>
    %47 = vector.multi_reduction <maximumf>, %46, %cst_24 [1] : vector<8x8xf32> to vector<8xf32>
    %48 = vector.shape_cast %47 : vector<8xf32> to vector<8x1xf32>
    %49 = arith.maximumf %41, %48 : vector<8x1xf32>
    %50 = arith.subf %41, %49 : vector<8x1xf32>
    %51 = math.exp %50 : vector<8x1xf32>
    %52 = vector.broadcast %49 : vector<8x1xf32> to vector<8x8xf32>
    %53 = arith.subf %46, %52 : vector<8x8xf32>
    %54 = math.exp %53 : vector<8x8xf32>
    %55 = arith.mulf %51, %42 : vector<8x1xf32>
    %cst_25 = arith.constant dense<0.000000e+00> : vector<8xf32>
    %56 = vector.multi_reduction <add>, %54, %cst_25 [1] : vector<8x8xf32> to vector<8xf32>
    %57 = vector.shape_cast %56 : vector<8xf32> to vector<8x1xf32>
    %58 = arith.addf %55, %57 : vector<8x1xf32>
    %59 = vector.broadcast %51 : vector<8x1xf32> to vector<8x8xf32>
    %60 = arith.mulf %59, %43 : vector<8x8xf32>
    %61 = arith.truncf %54 : vector<8x8xf32> to vector<8x8xbf16>
    %cst_26 = arith.constant dense<0.000000e+00> : vector<8x8xf32>
    %62 = tpu.matmul %61, %45, %cst_26 {dimension_numbers = #tpu.dot_dimension_numbers<[1], [0], [0], [1], [0, 0, 1, 1], [], []>} : vector<8x8xbf16>, vector<8x8xbf16>, vector<8x8xf32> -> vector<8x8xf32>
    %63 = arith.addf %60, %62 : vector<8x8xf32>
    %64 = tpu.reciprocal %58 {approx = true} : vector<8x1xf32> -> vector<8x1xf32>
    %65 = vector.broadcast %64 : vector<8x1xf32> to vector<8x8xf32>
    %66 = arith.mulf %63, %65 : vector<8x8xf32>
    %67 = arith.truncf %66 : vector<8x8xf32> to vector<8x8xbf16>
    %c0_27 = arith.constant 0 : index
    %c8_28 = arith.constant 8 : index
    %68 = vector.load %arg10[%c0_27, %c8_28] : memref<8x32xbf16, #tpu.memory_space<vmem>>, vector<8x8xbf16>
    tpu.vector_store %arg10[%c0_27, %c8_28], %67 {strides = array<i32>} : memref<8x32xbf16, #tpu.memory_space<vmem>>, vector<8x8xbf16>,
    %69 = vector.extract_strided_slice %8 {offsets = [0, 16], sizes = [8, 8], strides = [1, 1]} : vector<8x32xf32> to vector<8x8xf32>
    %70 = arith.truncf %69 : vector<8x8xf32> to vector<8x8xbf16>
    %cst_29 = arith.constant 0xFF800000 : f32
    %71 = vector.broadcast %cst_29 : f32 to vector<8x1xf32>
    %cst_30 = arith.constant 0.000000e+00 : f32
    %72 = vector.broadcast %cst_30 : f32 to vector<8x1xf32>
    %cst_31 = arith.constant 0.000000e+00 : f32
    %73 = vector.broadcast %cst_31 : f32 to vector<8x8xf32>
    %c0_32 = arith.constant 0 : index
    %c16 = arith.constant 16 : index
    %74 = vector.load %arg9[%c0_32, %c16] : memref<8x64xbf16, #tpu.memory_space<vmem>>, vector<8x8xbf16>
    %c0_33 = arith.constant 0 : index
    %c48 = arith.constant 48 : index
    %75 = vector.load %arg9[%c0_33, %c48] : memref<8x64xbf16, #tpu.memory_space<vmem>>, vector<8x8xbf16>
    %cst_34 = arith.constant dense<0.000000e+00> : vector<8x8xf32>
    %76 = tpu.matmul %70, %74, %cst_34 {dimension_numbers = #tpu.dot_dimension_numbers<[1], [1], [0], [0], [0, 0, 1, 0], [], []>} : vector<8x8xbf16>, vector<8x8xbf16>, vector<8x8xf32> -> vector<8x8xf32>
    %cst_35 = arith.constant dense<0xFF800000> : vector<8xf32>
    %77 = vector.multi_reduction <maximumf>, %76, %cst_35 [1] : vector<8x8xf32> to vector<8xf32>
    %78 = vector.shape_cast %77 : vector<8xf32> to vector<8x1xf32>
    %79 = arith.maximumf %71, %78 : vector<8x1xf32>
    %80 = arith.subf %71, %79 : vector<8x1xf32>
    %81 = math.exp %80 : vector<8x1xf32>
    %82 = vector.broadcast %79 : vector<8x1xf32> to vector<8x8xf32>
    %83 = arith.subf %76, %82 : vector<8x8xf32>
    %84 = math.exp %83 : vector<8x8xf32>
    %85 = arith.mulf %81, %72 : vector<8x1xf32>
    %cst_36 = arith.constant dense<0.000000e+00> : vector<8xf32>
    %86 = vector.multi_reduction <add>, %84, %cst_36 [1] : vector<8x8xf32> to vector<8xf32>
    %87 = vector.shape_cast %86 : vector<8xf32> to vector<8x1xf32>
    %88 = arith.addf %85, %87 : vector<8x1xf32>
    %89 = vector.broadcast %81 : vector<8x1xf32> to vector<8x8xf32>
    %90 = arith.mulf %89, %73 : vector<8x8xf32>
    %91 = arith.truncf %84 : vector<8x8xf32> to vector<8x8xbf16>
    %cst_37 = arith.constant dense<0.000000e+00> : vector<8x8xf32>
    %92 = tpu.matmul %91, %75, %cst_37 {dimension_numbers = #tpu.dot_dimension_numbers<[1], [0], [0], [1], [0, 0, 1, 1], [], []>} : vector<8x8xbf16>, vector<8x8xbf16>, vector<8x8xf32> -> vector<8x8xf32>
    %93 = arith.addf %90, %92 : vector<8x8xf32>
    %94 = tpu.reciprocal %88 {approx = true} : vector<8x1xf32> -> vector<8x1xf32>
    %95 = vector.broadcast %94 : vector<8x1xf32> to vector<8x8xf32>
    %96 = arith.mulf %93, %95 : vector<8x8xf32>
    %97 = arith.truncf %96 : vector<8x8xf32> to vector<8x8xbf16>
    %c0_38 = arith.constant 0 : index
    %c16_39 = arith.constant 16 : index
    %98 = vector.load %arg10[%c0_38, %c16_39] : memref<8x32xbf16, #tpu.memory_space<vmem>>, vector<8x8xbf16>
    tpu.vector_store %arg10[%c0_38, %c16_39], %97 {strides = array<i32>} : memref<8x32xbf16, #tpu.memory_space<vmem>>, vector<8x8xbf16>,
    %99 = vector.extract_strided_slice %8 {offsets = [0, 24], sizes = [8, 8], strides = [1, 1]} : vector<8x32xf32> to vector<8x8xf32>
    %100 = arith.truncf %99 : vector<8x8xf32> to vector<8x8xbf16>
    %cst_40 = arith.constant 0xFF800000 : f32
    %101 = vector.broadcast %cst_40 : f32 to vector<8x1xf32>
    %cst_41 = arith.constant 0.000000e+00 : f32
    %102 = vector.broadcast %cst_41 : f32 to vector<8x1xf32>
    %cst_42 = arith.constant 0.000000e+00 : f32
    %103 = vector.broadcast %cst_42 : f32 to vector<8x8xf32>
    %c0_43 = arith.constant 0 : index
    %c24 = arith.constant 24 : index
    %104 = vector.load %arg9[%c0_43, %c24] : memref<8x64xbf16, #tpu.memory_space<vmem>>, vector<8x8xbf16>
    %c0_44 = arith.constant 0 : index
    %c56 = arith.constant 56 : index
    %105 = vector.load %arg9[%c0_44, %c56] : memref<8x64xbf16, #tpu.memory_space<vmem>>, vector<8x8xbf16>
    %cst_45 = arith.constant dense<0.000000e+00> : vector<8x8xf32>
    %106 = tpu.matmul %100, %104, %cst_45 {dimension_numbers = #tpu.dot_dimension_numbers<[1], [1], [0], [0], [0, 0, 1, 0], [], []>} : vector<8x8xbf16>, vector<8x8xbf16>, vector<8x8xf32> -> vector<8x8xf32>
    %cst_46 = arith.constant dense<0xFF800000> : vector<8xf32>
    %107 = vector.multi_reduction <maximumf>, %106, %cst_46 [1] : vector<8x8xf32> to vector<8xf32>
    %108 = vector.shape_cast %107 : vector<8xf32> to vector<8x1xf32>
    %109 = arith.maximumf %101, %108 : vector<8x1xf32>
    %110 = arith.subf %101, %109 : vector<8x1xf32>
    %111 = math.exp %110 : vector<8x1xf32>
    %112 = vector.broadcast %109 : vector<8x1xf32> to vector<8x8xf32>
    %113 = arith.subf %106, %112 : vector<8x8xf32>
    %114 = math.exp %113 : vector<8x8xf32>
    %115 = arith.mulf %111, %102 : vector<8x1xf32>
    %cst_47 = arith.constant dense<0.000000e+00> : vector<8xf32>
    %116 = vector.multi_reduction <add>, %114, %cst_47 [1] : vector<8x8xf32> to vector<8xf32>
    %117 = vector.shape_cast %116 : vector<8xf32> to vector<8x1xf32>
    %118 = arith.addf %115, %117 : vector<8x1xf32>
    %119 = vector.broadcast %111 : vector<8x1xf32> to vector<8x8xf32>
    %120 = arith.mulf %119, %103 : vector<8x8xf32>
    %121 = arith.truncf %114 : vector<8x8xf32> to vector<8x8xbf16>
    %cst_48 = arith.constant dense<0.000000e+00> : vector<8x8xf32>
    %122 = tpu.matmul %121, %105, %cst_48 {dimension_numbers = #tpu.dot_dimension_numbers<[1], [0], [0], [1], [0, 0, 1, 1], [], []>} : vector<8x8xbf16>, vector<8x8xbf16>, vector<8x8xf32> -> vector<8x8xf32>
    %123 = arith.addf %120, %122 : vector<8x8xf32>
    %124 = tpu.reciprocal %118 {approx = true} : vector<8x1xf32> -> vector<8x1xf32>
    %125 = vector.broadcast %124 : vector<8x1xf32> to vector<8x8xf32>
    %126 = arith.mulf %123, %125 : vector<8x8xf32>
    %127 = arith.truncf %126 : vector<8x8xf32> to vector<8x8xbf16>
    %c0_49 = arith.constant 0 : index
    %c24_50 = arith.constant 24 : index
    %128 = vector.load %arg10[%c0_49, %c24_50] : memref<8x32xbf16, #tpu.memory_space<vmem>>, vector<8x8xbf16>
    tpu.vector_store %arg10[%c0_49, %c24_50], %127 {strides = array<i32>} : memref<8x32xbf16, #tpu.memory_space<vmem>>, vector<8x8xbf16>,
    %c0_51 = arith.constant 0 : index
    %c0_52 = arith.constant 0 : index
    %129 = vector.load %arg10[%c0_51, %c0_52] : memref<8x32xbf16, #tpu.memory_space<vmem>>, vector<8x32xbf16>
    %c0_53 = arith.constant 0 : index
    %c0_54 = arith.constant 0 : index
    %130 = vector.load %arg6[%c0_53, %c0_54] : memref<32x32xbf16, #tpu.memory_space<vmem>>, vector<32x32xbf16>
    %cst_55 = arith.constant dense<0.000000e+00> : vector<8x32xf32>
    %131 = tpu.matmul %129, %130, %cst_55 {dimension_numbers = #tpu.dot_dimension_numbers<[1], [0], [0], [1], [0, 0, 1, 1], [], []>} : vector<8x32xbf16>, vector<32x32xbf16>, vector<8x32xf32> -> vector<8x32xf32>
    %c0_56 = arith.constant 0 : index
    %c0_57 = arith.constant 0 : index
    %132 = vector.load %arg7[%c0_56, %c0_57] : memref<1x32xf32, #tpu.memory_space<vmem>>, vector<1x32xf32>
    %133 = vector.broadcast %132 : vector<1x32xf32> to vector<8x32xf32>
    %134 = arith.addf %131, %133 : vector<8x32xf32>
    %c0_58 = arith.constant 0 : index
    %c0_59 = arith.constant 0 : index
    %c0_60 = arith.constant 0 : index
    %135 = vector.load %arg8[%c0_58, %c0_59, %c0_60] : memref<1x8x32xf32, #tpu.memory_space<vmem>>, vector<1x8x32xf32>
    %136 = vector.shape_cast %135 : vector<1x8x32xf32> to vector<8x32xf32>
    %137 = vector.shape_cast %134 : vector<8x32xf32> to vector<1x8x32xf32>
    tpu.vector_store %arg8[%c0_58, %c0_59, %c0_60], %137 {strides = array<i32>} : memref<1x8x32xf32, #tpu.memory_space<vmem>>, vector<1x8x32xf32>,
    return
  }
  func.func @transform_0(%arg0: i32, %arg1: i32) -> (i32, i32, i32) {
    %c0_i32 = arith.constant 0 : i32
    %c0_i32_0 = arith.constant 0 : i32
    return %arg0, %arg1, %c0_i32 : i32, i32, i32
  }
  func.func @transform_1(%arg0: i32, %arg1: i32) -> (i32, i32, i32) {
    %c0_i32 = arith.constant 0 : i32
    %c0_i32_0 = arith.constant 0 : i32
    %c0_i32_1 = arith.constant 0 : i32
    return %arg0, %c0_i32, %c0_i32_0 : i32, i32, i32
  }
  func.func @transform_2(%arg0: i32, %arg1: i32) -> (i32, i32) {
    %c0_i32 = arith.constant 0 : i32
    %c0_i32_0 = arith.constant 0 : i32
    %c0_i32_1 = arith.constant 0 : i32
    return %c0_i32, %c0_i32_0 : i32, i32
  }
  func.func @transform_3(%arg0: i32, %arg1: i32) -> (i32, i32) {
    %c0_i32 = arith.constant 0 : i32
    %c0_i32_0 = arith.constant 0 : i32
    %c0_i32_1 = arith.constant 0 : i32
    return %c0_i32, %c0_i32_0 : i32, i32
  }
  func.func @transform_4(%arg0: i32, %arg1: i32) -> (i32, i32) {
    %c0_i32 = arith.constant 0 : i32
    %c0_i32_0 = arith.constant 0 : i32
    %c0_i32_1 = arith.constant 0 : i32
    return %c0_i32, %c0_i32_0 : i32, i32
  }
  func.func @transform_5(%arg0: i32, %arg1: i32) -> (i32, i32) {
    %c0_i32 = arith.constant 0 : i32
    %c0_i32_0 = arith.constant 0 : i32
    %c0_i32_1 = arith.constant 0 : i32
    return %c0_i32, %c0_i32_0 : i32, i32
  }
  func.func @transform_6(%arg0: i32, %arg1: i32) -> (i32, i32, i32) {
    %c0_i32 = arith.constant 0 : i32
    %c0_i32_0 = arith.constant 0 : i32
    return %arg0, %arg1, %c0_i32 : i32, i32, i32
  }
}

module attributes {stable_mosaic.version = 11 : i64} {
  func.func @_cross_attn_kernel(%arg0: i32, %arg1: i32, %arg2: memref<1x8x32xbf16, #tpu.memory_space<vmem>>, %arg3: memref<1x8x32xbf16, #tpu.memory_space<vmem>>, %arg4: memref<32x32xbf16, #tpu.memory_space<vmem>>, %arg5: memref<32x64xbf16, #tpu.memory_space<vmem>>, %arg6: memref<32x32xbf16, #tpu.memory_space<vmem>>, %arg7: memref<1x32xf32, #tpu.memory_space<vmem>>, %arg8: memref<1x8x32xf32, #tpu.memory_space<vmem>>, %arg9: memref<8x64xbf16, #tpu.memory_space<vmem>>, %arg10: memref<8x32xbf16, #tpu.memory_space<vmem>>) attributes {dimension_semantics = [#tpu.dimension_semantics<parallel>, #tpu.dimension_semantics<arbitrary>], iteration_bounds = array<i64: 2, 1>, scalar_prefetch = 0 : i64, scratch_operands = 2 : i64, tpu.core_type = #tpu.core_type<tc>, window_params = [{transform_indices = @transform_0, window_bounds = array<i64: 1, 8, 32>}, {transform_indices = @transform_1, window_bounds = array<i64: 1, 8, 32>}, {pipeline_mode = #tpu.pipeline_mode<synchronous>, transform_indices = @transform_2, window_bounds = array<i64: 32, 32>}, {pipeline_mode = #tpu.pipeline_mode<synchronous>, transform_indices = @transform_3, window_bounds = array<i64: 32, 64>}, {pipeline_mode = #tpu.pipeline_mode<synchronous>, transform_indices = @transform_4, window_bounds = array<i64: 32, 32>}, {pipeline_mode = #tpu.pipeline_mode<synchronous>, transform_indices = @transform_5, window_bounds = array<i64: 1, 32>}, {transform_indices = @transform_6, window_bounds = array<i64: 1, 8, 32>}]} {
    %c0_i32 = arith.constant 0 : i32
    %0 = arith.cmpi eq, %arg1, %c0_i32 : i32
    %1 = arith.extui %0 : i1 to i32
    %c0_i32_0 = arith.constant 0 : i32
    %2 = arith.cmpi ne, %1, %c0_i32_0 : i32
    scf.if %2 {
      %c0_61 = arith.constant 0 : index
      %c0_62 = arith.constant 0 : index
      %c0_63 = arith.constant 0 : index
      %138 = vector.load %arg3[%c0_61, %c0_62, %c0_63] : memref<1x8x32xbf16, #tpu.memory_space<vmem>>, vector<1x8x32xbf16>
      %139 = vector.shape_cast %138 : vector<1x8x32xbf16> to vector<8x32xbf16>
      %c0_64 = arith.constant 0 : index
      %c0_65 = arith.constant 0 : index
      %140 = vector.load %arg5[%c0_64, %c0_65] : memref<32x64xbf16, #tpu.memory_space<vmem>>, vector<32x64xbf16>
      %cst_66 = arith.constant dense<0.000000e+00> : vector<8x64xf32>
      %141 = tpu.matmul %139, %140, %cst_66 {dimension_numbers = #tpu.dot_dimension_numbers<[1], [0], [0], [1], [0, 0, 1, 1], [], []>} : vector<8x32xbf16>, vector<32x64xbf16>, vector<8x64xf32> -> vector<8x64xf32>
      %142 = arith.truncf %141 : vector<8x64xf32> to vector<8x64xbf16>
      %c0_67 = arith.constant 0 : index
      %c0_68 = arith.constant 0 : index
      %143 = vector.load %arg9[%c0_67, %c0_68] : memref<8x64xbf16, #tpu.memory_space<vmem>>, vector<8x64xbf16>
      tpu.vector_store %arg9[%c0_67, %c0_68], %142 {strides = array<i32>} : memref<8x64xbf16, #tpu.memory_space<vmem>>, vector<8x64xbf16>,
    } else {
    }
    %c0 = arith.constant 0 : index
    %c0_1 = arith.constant 0 : index
    %c0_2 = arith.constant 0 : index
    %3 = vector.load %arg2[%c0, %c0_1, %c0_2] : memref<1x8x32xbf16, #tpu.memory_space<vmem>>, vector<1x8x32xbf16>
    %4 = vector.shape_cast %3 : vector<1x8x32xbf16> to vector<8x32xbf16>
    %c0_3 = arith.constant 0 : index
    %c0_4 = arith.constant 0 : index
    %5 = vector.load %arg4[%c0_3, %c0_4] : memref<32x32xbf16, #tpu.memory_space<vmem>>, vector<32x32xbf16>
    %cst = arith.constant dense<0.000000e+00> : vector<8x32xf32>
    %6 = tpu.matmul %4, %5, %cst {dimension_numbers = #tpu.dot_dimension_numbers<[1], [0], [0], [1], [0, 0, 1, 1], [], []>} : vector<8x32xbf16>, vector<32x32xbf16>, vector<8x32xf32> -> vector<8x32xf32>
    %cst_5 = arith.constant 0.176776692 : f32
    %7 = vector.broadcast %cst_5 : f32 to vector<8x32xf32>
    %8 = arith.mulf %6, %7 : vector<8x32xf32>
    %9 = vector.extract_strided_slice %8 {offsets = [0, 0], sizes = [8, 8], strides = [1, 1]} : vector<8x32xf32> to vector<8x8xf32>
    %10 = arith.truncf %9 : vector<8x8xf32> to vector<8x8xbf16>
    %cst_6 = arith.constant 0xFF800000 : f32
    %11 = vector.broadcast %cst_6 : f32 to vector<8x1xf32>
    %cst_7 = arith.constant 0.000000e+00 : f32
    %12 = vector.broadcast %cst_7 : f32 to vector<8x1xf32>
    %cst_8 = arith.constant 0.000000e+00 : f32
    %13 = vector.broadcast %cst_8 : f32 to vector<8x8xf32>
    %c0_9 = arith.constant 0 : index
    %c0_10 = arith.constant 0 : index
    %14 = vector.load %arg9[%c0_9, %c0_10] : memref<8x64xbf16, #tpu.memory_space<vmem>>, vector<8x8xbf16>
    %c0_11 = arith.constant 0 : index
    %c32 = arith.constant 32 : index
    %15 = vector.load %arg9[%c0_11, %c32] : memref<8x64xbf16, #tpu.memory_space<vmem>>, vector<8x8xbf16>
    %cst_12 = arith.constant dense<0.000000e+00> : vector<8x8xf32>
    %16 = tpu.matmul %10, %14, %cst_12 {dimension_numbers = #tpu.dot_dimension_numbers<[1], [1], [0], [0], [0, 0, 1, 0], [], []>} : vector<8x8xbf16>, vector<8x8xbf16>, vector<8x8xf32> -> vector<8x8xf32>
    %cst_13 = arith.constant dense<0xFF800000> : vector<8xf32>
    %17 = vector.multi_reduction <maximumf>, %16, %cst_13 [1] : vector<8x8xf32> to vector<8xf32>
    %18 = vector.shape_cast %17 : vector<8xf32> to vector<8x1xf32>
    %19 = arith.maximumf %11, %18 : vector<8x1xf32>
    %20 = arith.subf %11, %19 : vector<8x1xf32>
    %21 = math.exp %20 : vector<8x1xf32>
    %22 = vector.broadcast %19 : vector<8x1xf32> to vector<8x8xf32>
    %23 = arith.subf %16, %22 : vector<8x8xf32>
    %24 = math.exp %23 : vector<8x8xf32>
    %25 = arith.mulf %21, %12 : vector<8x1xf32>
    %cst_14 = arith.constant dense<0.000000e+00> : vector<8xf32>
    %26 = vector.multi_reduction <add>, %24, %cst_14 [1] : vector<8x8xf32> to vector<8xf32>
    %27 = vector.shape_cast %26 : vector<8xf32> to vector<8x1xf32>
    %28 = arith.addf %25, %27 : vector<8x1xf32>
    %29 = vector.broadcast %21 : vector<8x1xf32> to vector<8x8xf32>
    %30 = arith.mulf %29, %13 : vector<8x8xf32>
    %31 = arith.truncf %24 : vector<8x8xf32> to vector<8x8xbf16>
    %cst_15 = arith.constant dense<0.000000e+00> : vector<8x8xf32>
    %32 = tpu.matmul %31, %15, %cst_15 {dimension_numbers = #tpu.dot_dimension_numbers<[1], [0], [0], [1], [0, 0, 1, 1], [], []>} : vector<8x8xbf16>, vector<8x8xbf16>, vector<8x8xf32> -> vector<8x8xf32>
    %33 = arith.addf %30, %32 : vector<8x8xf32>
    %34 = tpu.reciprocal %28 {approx = true} : vector<8x1xf32> -> vector<8x1xf32>
    %35 = vector.broadcast %34 : vector<8x1xf32> to vector<8x8xf32>
    %36 = arith.mulf %33, %35 : vector<8x8xf32>
    %37 = arith.truncf %36 : vector<8x8xf32> to vector<8x8xbf16>
    %c0_16 = arith.constant 0 : index
    %c0_17 = arith.constant 0 : index
    %38 = vector.load %arg10[%c0_16, %c0_17] : memref<8x32xbf16, #tpu.memory_space<vmem>>, vector<8x8xbf16>
    tpu.vector_store %arg10[%c0_16, %c0_17], %37 {strides = array<i32>} : memref<8x32xbf16, #tpu.memory_space<vmem>>, vector<8x8xbf16>,
    %39 = vector.extract_strided_slice %8 {offsets = [0, 8], sizes = [8, 8], strides = [1, 1]} : vector<8x32xf32> to vector<8x8xf32>
    %40 = arith.truncf %39 : vector<8x8xf32> to vector<8x8xbf16>
    %cst_18 = arith.constant 0xFF800000 : f32
    %41 = vector.broadcast %cst_18 : f32 to vector<8x1xf32>
    %cst_19 = arith.constant 0.000000e+00 : f32
    %42 = vector.broadcast %cst_19 : f32 to vector<8x1xf32>
    %cst_20 = arith.constant 0.000000e+00 : f32
    %43 = vector.broadcast %cst_20 : f32 to vector<8x8xf32>
    %c0_21 = arith.constant 0 : index
    %c8 = arith.constant 8 : index
    %44 = vector.load %arg9[%c0_21, %c8] : memref<8x64xbf16, #tpu.memory_space<vmem>>, vector<8x8xbf16>
    %c0_22 = arith.constant 0 : index
    %c40 = arith.constant 40 : index
    %45 = vector.load %arg9[%c0_22, %c40] : memref<8x64xbf16, #tpu.memory_space<vmem>>, vector<8x8xbf16>
    %cst_23 = arith.constant dense<0.000000e+00> : vector<8x8xf32>
    %46 = tpu.matmul %40, %44, %cst_23 {dimension_numbers = #tpu.dot_dimension_numbers<[1], [1], [0], [0], [0, 0, 1, 0], [], []>} : vector<8x8xbf16>, vector<8x8xbf16>, vector<8x8xf32> -> vector<8x8xf32>
    %cst_24 = arith.constant dense<0xFF800000> : vector<8xf32>
    %47 = vector.multi_reduction <maximumf>, %46, %cst_24 [1] : vector<8x8xf32> to vector<8xf32>
    %48 = vector.shape_cast %47 : vector<8xf32> to vector<8x1xf32>
    %49 = arith.maximumf %41, %48 : vector<8x1xf32>
    %50 = arith.subf %41, %49 : vector<8x1xf32>
    %51 = math.exp %50 : vector<8x1xf32>
    %52 = vector.broadcast %49 : vector<8x1xf32> to vector<8x8xf32>
    %53 = arith.subf %46, %52 : vector<8x8xf32>
    %54 = math.exp %53 : vector<8x8xf32>
    %55 = arith.mulf %51, %42 : vector<8x1xf32>
    %cst_25 = arith.constant dense<0.000000e+00> : vector<8xf32>
    %56 = vector.multi_reduction <add>, %54, %cst_25 [1] : vector<8x8xf32> to vector<8xf32>
    %57 = vector.shape_cast %56 : vector<8xf32> to vector<8x1xf32>
    %58 = arith.addf %55, %57 : vector<8x1xf32>
    %59 = vector.broadcast %51 : vector<8x1xf32> to vector<8x8xf32>
    %60 = arith.mulf %59, %43 : vector<8x8xf32>
    %61 = arith.truncf %54 : vector<8x8xf32> to vector<8x8xbf16>
    %cst_26 = arith.constant dense<0.000000e+00> : vector<8x8xf32>
    %62 = tpu.matmul %61, %45, %cst_26 {dimension_numbers = #tpu.dot_dimension_numbers<[1], [0], [0], [1], [0, 0, 1, 1], [], []>} : vector<8x8xbf16>, vector<8x8xbf16>, vector<8x8xf32> -> vector<8x8xf32>
    %63 = arith.addf %60, %62 : vector<8x8xf32>
    %64 = tpu.reciprocal %58 {approx = true} : vector<8x1xf32> -> vector<8x1xf32>
    %65 = vector.broadcast %64 : vector<8x1xf32> to vector<8x8xf32>
    %66 = arith.mulf %63, %65 : vector<8x8xf32>
    %67 = arith.truncf %66 : vector<8x8xf32> to vector<8x8xbf16>
    %c0_27 = arith.constant 0 : index
    %c8_28 = arith.constant 8 : index
    %68 = vector.load %arg10[%c0_27, %c8_28] : memref<8x32xbf16, #tpu.memory_space<vmem>>, vector<8x8xbf16>
    tpu.vector_store %arg10[%c0_27, %c8_28], %67 {strides = array<i32>} : memref<8x32xbf16, #tpu.memory_space<vmem>>, vector<8x8xbf16>,
    %69 = vector.extract_strided_slice %8 {offsets = [0, 16], sizes = [8, 8], strides = [1, 1]} : vector<8x32xf32> to vector<8x8xf32>
    %70 = arith.truncf %69 : vector<8x8xf32> to vector<8x8xbf16>
    %cst_29 = arith.constant 0xFF800000 : f32
    %71 = vector.broadcast %cst_29 : f32 to vector<8x1xf32>
    %cst_30 = arith.constant 0.000000e+00 : f32
    %72 = vector.broadcast %cst_30 : f32 to vector<8x1xf32>
    %cst_31 = arith.constant 0.000000e+00 : f32
    %73 = vector.broadcast %cst_31 : f32 to vector<8x8xf32>
    %c0_32 = arith.constant 0 : index
    %c16 = arith.constant 16 : index
    %74 = vector.load %arg9[%c0_32, %c16] : memref<8x64xbf16, #tpu.memory_space<vmem>>, vector<8x8xbf16>
    %c0_33 = arith.constant 0 : index
    %c48 = arith.constant 48 : index
    %75 = vector.load %arg9[%c0_33, %c48] : memref<8x64xbf16, #tpu.memory_space<vmem>>, vector<8x8xbf16>
    %cst_34 = arith.constant dense<0.000000e+00> : vector<8x8xf32>
    %76 = tpu.matmul %70, %74, %cst_34 {dimension_numbers = #tpu.dot_dimension_numbers<[1], [1], [0], [0], [0, 0, 1, 0], [], []>} : vector<8x8xbf16>, vector<8x8xbf16>, vector<8x8xf32> -> vector<8x8xf32>
    %cst_35 = arith.constant dense<0xFF800000> : vector<8xf32>
    %77 = vector.multi_reduction <maximumf>, %76, %cst_35 [1] : vector<8x8xf32> to vector<8xf32>
    %78 = vector.shape_cast %77 : vector<8xf32> to vector<8x1xf32>
    %79 = arith.maximumf %71, %78 : vector<8x1xf32>
    %80 = arith.subf %71, %79 : vector<8x1xf32>
    %81 = math.exp %80 : vector<8x1xf32>
    %82 = vector.broadcast %79 : vector<8x1xf32> to vector<8x8xf32>
    %83 = arith.subf %76, %82 : vector<8x8xf32>
    %84 = math.exp %83 : vector<8x8xf32>
    %85 = arith.mulf %81, %72 : vector<8x1xf32>
    %cst_36 = arith.constant dense<0.000000e+00> : vector<8xf32>
    %86 = vector.multi_reduction <add>, %84, %cst_36 [1] : vector<8x8xf32> to vector<8xf32>
    %87 = vector.shape_cast %86 : vector<8xf32> to vector<8x1xf32>
    %88 = arith.addf %85, %87 : vector<8x1xf32>
    %89 = vector.broadcast %81 : vector<8x1xf32> to vector<8x8xf32>
    %90 = arith.mulf %89, %73 : vector<8x8xf32>
    %91 = arith.truncf %84 : vector<8x8xf32> to vector<8x8xbf16>
    %cst_37 = arith.constant dense<0.000000e+00> : vector<8x8xf32>
    %92 = tpu.matmul %91, %75, %cst_37 {dimension_numbers = #tpu.dot_dimension_numbers<[1], [0], [0], [1], [0, 0, 1, 1], [], []>} : vector<8x8xbf16>, vector<8x8xbf16>, vector<8x8xf32> -> vector<8x8xf32>
    %93 = arith.addf %90, %92 : vector<8x8xf32>
    %94 = tpu.reciprocal %88 {approx = true} : vector<8x1xf32> -> vector<8x1xf32>
    %95 = vector.broadcast %94 : vector<8x1xf32> to vector<8x8xf32>
    %96 = arith.mulf %93, %95 : vector<8x8xf32>
    %97 = arith.truncf %96 : vector<8x8xf32> to vector<8x8xbf16>
    %c0_38 = arith.constant 0 : index
    %c16_39 = arith.constant 16 : index
    %98 = vector.load %arg10[%c0_38, %c16_39] : memref<8x32xbf16, #tpu.memory_space<vmem>>, vector<8x8xbf16>
    tpu.vector_store %arg10[%c0_38, %c16_39], %97 {strides = array<i32>} : memref<8x32xbf16, #tpu.memory_space<vmem>>, vector<8x8xbf16>,
    %99 = vector.extract_strided_slice %8 {offsets = [0, 24], sizes = [8, 8], strides = [1, 1]} : vector<8x32xf32> to vector<8x8xf32>
    %100 = arith.truncf %99 : vector<8x8xf32> to vector<8x8xbf16>
    %cst_40 = arith.constant 0xFF800000 : f32
    %101 = vector.broadcast %cst_40 : f32 to vector<8x1xf32>
    %cst_41 = arith.constant 0.000000e+00 : f32
    %102 = vector.broadcast %cst_41 : f32 to vector<8x1xf32>
    %cst_42 = arith.constant 0.000000e+00 : f32
    %103 = vector.broadcast %cst_42 : f32 to vector<8x8xf32>
    %c0_43 = arith.constant 0 : index
    %c24 = arith.constant 24 : index
    %104 = vector.load %arg9[%c0_43, %c24] : memref<8x64xbf16, #tpu.memory_space<vmem>>, vector<8x8xbf16>
    %c0_44 = arith.constant 0 : index
    %c56 = arith.constant 56 : index
    %105 = vector.load %arg9[%c0_44, %c56] : memref<8x64xbf16, #tpu.memory_space<vmem>>, vector<8x8xbf16>
    %cst_45 = arith.constant dense<0.000000e+00> : vector<8x8xf32>
    %106 = tpu.matmul %100, %104, %cst_45 {dimension_numbers = #tpu.dot_dimension_numbers<[1], [1], [0], [0], [0, 0, 1, 0], [], []>} : vector<8x8xbf16>, vector<8x8xbf16>, vector<8x8xf32> -> vector<8x8xf32>
    %cst_46 = arith.constant dense<0xFF800000> : vector<8xf32>
    %107 = vector.multi_reduction <maximumf>, %106, %cst_46 [1] : vector<8x8xf32> to vector<8xf32>
    %108 = vector.shape_cast %107 : vector<8xf32> to vector<8x1xf32>
    %109 = arith.maximumf %101, %108 : vector<8x1xf32>
    %110 = arith.subf %101, %109 : vector<8x1xf32>
    %111 = math.exp %110 : vector<8x1xf32>
    %112 = vector.broadcast %109 : vector<8x1xf32> to vector<8x8xf32>
    %113 = arith.subf %106, %112 : vector<8x8xf32>
    %114 = math.exp %113 : vector<8x8xf32>
    %115 = arith.mulf %111, %102 : vector<8x1xf32>
    %cst_47 = arith.constant dense<0.000000e+00> : vector<8xf32>
    %116 = vector.multi_reduction <add>, %114, %cst_47 [1] : vector<8x8xf32> to vector<8xf32>
    %117 = vector.shape_cast %116 : vector<8xf32> to vector<8x1xf32>
    %118 = arith.addf %115, %117 : vector<8x1xf32>
    %119 = vector.broadcast %111 : vector<8x1xf32> to vector<8x8xf32>
    %120 = arith.mulf %119, %103 : vector<8x8xf32>
    %121 = arith.truncf %114 : vector<8x8xf32> to vector<8x8xbf16>
    %cst_48 = arith.constant dense<0.000000e+00> : vector<8x8xf32>
    %122 = tpu.matmul %121, %105, %cst_48 {dimension_numbers = #tpu.dot_dimension_numbers<[1], [0], [0], [1], [0, 0, 1, 1], [], []>} : vector<8x8xbf16>, vector<8x8xbf16>, vector<8x8xf32> -> vector<8x8xf32>
    %123 = arith.addf %120, %122 : vector<8x8xf32>
    %124 = tpu.reciprocal %118 {approx = true} : vector<8x1xf32> -> vector<8x1xf32>
    %125 = vector.broadcast %124 : vector<8x1xf32> to vector<8x8xf32>
    %126 = arith.mulf %123, %125 : vector<8x8xf32>
    %127 = arith.truncf %126 : vector<8x8xf32> to vector<8x8xbf16>
    %c0_49 = arith.constant 0 : index
    %c24_50 = arith.constant 24 : index
    %128 = vector.load %arg10[%c0_49, %c24_50] : memref<8x32xbf16, #tpu.memory_space<vmem>>, vector<8x8xbf16>
    tpu.vector_store %arg10[%c0_49, %c24_50], %127 {strides = array<i32>} : memref<8x32xbf16, #tpu.memory_space<vmem>>, vector<8x8xbf16>,
    %c0_51 = arith.constant 0 : index
    %c0_52 = arith.constant 0 : index
    %129 = vector.load %arg10[%c0_51, %c0_52] : memref<8x32xbf16, #tpu.memory_space<vmem>>, vector<8x32xbf16>
    %c0_53 = arith.constant 0 : index
    %c0_54 = arith.constant 0 : index
    %130 = vector.load %arg6[%c0_53, %c0_54] : memref<32x32xbf16, #tpu.memory_space<vmem>>, vector<32x32xbf16>
    %cst_55 = arith.constant dense<0.000000e+00> : vector<8x32xf32>
    %131 = tpu.matmul %129, %130, %cst_55 {dimension_numbers = #tpu.dot_dimension_numbers<[1], [0], [0], [1], [0, 0, 1, 1], [], []>} : vector<8x32xbf16>, vector<32x32xbf16>, vector<8x32xf32> -> vector<8x32xf32>
    %c0_56 = arith.constant 0 : index
    %c0_57 = arith.constant 0 : index
    %132 = vector.load %arg7[%c0_56, %c0_57] : memref<1x32xf32, #tpu.memory_space<vmem>>, vector<1x32xf32>
    %133 = vector.broadcast %132 : vector<1x32xf32> to vector<8x32xf32>
    %134 = arith.addf %131, %133 : vector<8x32xf32>
    %c0_58 = arith.constant 0 : index
    %c0_59 = arith.constant 0 : index
    %c0_60 = arith.constant 0 : index
    %135 = vector.load %arg8[%c0_58, %c0_59, %c0_60] : memref<1x8x32xf32, #tpu.memory_space<vmem>>, vector<1x8x32xf32>
    %136 = vector.shape_cast %135 : vector<1x8x32xf32> to vector<8x32xf32>
    %137 = vector.shape_cast %134 : vector<8x32xf32> to vector<1x8x32xf32>
    tpu.vector_store %arg8[%c0_58, %c0_59, %c0_60], %137 {strides = array<i32>} : memref<1x8x32xf32, #tpu.memory_space<vmem>>, vector<1x8x32xf32>,
    return
  }
  func.func @transform_0(%arg0: i32, %arg1: i32) -> (i32, i32, i32) {
    %c0_i32 = arith.constant 0 : i32
    %c0_i32_0 = arith.constant 0 : i32
    return %arg0, %arg1, %c0_i32 : i32, i32, i32
  }
  func.func @transform_1(%arg0: i32, %arg1: i32) -> (i32, i32, i32) {
    %c0_i32 = arith.constant 0 : i32
    %c0_i32_0 = arith.constant 0 : i32
    %c0_i32_1 = arith.constant 0 : i32
    return %arg0, %c0_i32, %c0_i32_0 : i32, i32, i32
  }
  func.func @transform_2(%arg0: i32, %arg1: i32) -> (i32, i32) {
    %c0_i32 = arith.constant 0 : i32
    %c0_i32_0 = arith.constant 0 : i32
    %c0_i32_1 = arith.constant 0 : i32
    return %c0_i32, %c0_i32_0 : i32, i32
  }
  func.func @transform_3(%arg0: i32, %arg1: i32) -> (i32, i32) {
    %c0_i32 = arith.constant 0 : i32
    %c0_i32_0 = arith.constant 0 : i32
    %c0_i32_1 = arith.constant 0 : i32
    return %c0_i32, %c0_i32_0 : i32, i32
  }
  func.func @transform_4(%arg0: i32, %arg1: i32) -> (i32, i32) {
    %c0_i32 = arith.constant 0 : i32
    %c0_i32_0 = arith.constant 0 : i32
    %c0_i32_1 = arith.constant 0 : i32
    return %c0_i32, %c0_i32_0 : i32, i32
  }
  func.func @transform_5(%arg0: i32, %arg1: i32) -> (i32, i32) {
    %c0_i32 = arith.constant 0 : i32
    %c0_i32_0 = arith.constant 0 : i32
    %c0_i32_1 = arith.constant 0 : i32
    return %c0_i32, %c0_i32_0 : i32, i32
  }
  func.func @transform_6(%arg0: i32, %arg1: i32) -> (i32, i32, i32) {
    %c0_i32 = arith.constant 0 : i32
    %c0_i32_0 = arith.constant 0 : i32
    return %arg0, %arg1, %c0_i32 : i32, i32, i32
  }
}

</mosaic_0001>

<llo_original>
// kernel: tpu_custom_call.1
$region0: #{tpu_custom_call.1}
  #allocation0 [shape = 'u32[]', space=smem, size = 0x4, offset = 0x4, fixed_abs, tag = 'smem constant byte address 0x4 - core index']
  #allocation1 [shape = 'u32[144,128]{1,0:T(1,128)}', space=vmem, size = 0x12000, scoped, tag = 'internal scratch']
  #allocation2 [shape = 'bf16[8,64]{1,0:T(8,128)(2,1)}', space=vmem, size = 0x800, scoped, tag = 'scratch operand']
  #allocation3 [shape = 'bf16[8,32]{1,0:T(8,128)(2,1)}', space=vmem, size = 0x800, scoped, tag = 'scratch operand']
  %s0 = inlined_call_operand.hbm [shape: bf16[2,8,32], index: 0, kind: input, shape index: {}]
  %s1 = inlined_call_operand.hbm [shape: bf16[2,8,32], index: 1, kind: input, shape index: {}]
  %s2 = inlined_call_operand.hbm [shape: bf16[32,32], index: 2, kind: input, shape index: {}]
  %s3 = inlined_call_operand.hbm [shape: bf16[32,64], index: 3, kind: input, shape index: {}]
  %s4 = inlined_call_operand.hbm [shape: bf16[32,32], index: 4, kind: input, shape index: {}]
  %s5 = inlined_call_operand.vmem [shape: f32[1,32], index: 5, kind: input, shape index: {}]
  %s6 = inlined_call_operand.hbm [shape: f32[2,8,32], index: 6, kind: output, shape index: {}]
  %s7 = sld [smem:[#allocation0]]
  $region81: #{tpu_custom_call.1} parent=0
    _
  %s9 = ssub.s32 1, %s7
  %s10 = scalar_select 0, %s9, %s7
  $region1: #{tpu_custom_call.1} parent=0
    #allocation4 [shape = 'u8[4096]{0}', space=vmem, size = 0x1000, scoped, tag = 'input window, operand 0']
    #allocation5 [shape = 's32[2]{0}', space=sflag, size = 0x8, scoped, tag = 'scoped memory for tpu_custom_call.1']
    #allocation6 [shape = 's32[2]{0}', space=sflag, size = 0x8, scoped, tag = 'scoped memory for tpu_custom_call.1']
    #allocation7 [shape = 'u8[2048]{0}', space=vmem, size = 0x800, scoped, tag = 'input window, operand 1, single buffered']
    #allocation8 [shape = 's32[1]{0}', space=sflag, size = 0x4, scoped, tag = 'scoped memory for tpu_custom_call.1']
    #allocation9 [shape = 'u8[8192]{0}', space=vmem, size = 0x2000, scoped, tag = 'input window, operand 2, single buffered']
    #allocation10 [shape = 'u8[8192]{0}', space=vmem, size = 0x2000, scoped, tag = 'input window, operand 3, single buffered']
    #allocation11 [shape = 's32[1]{0}', space=sflag, size = 0x4, scoped, tag = 'scoped memory for tpu_custom_call.1']
    #allocation12 [shape = 'u8[8192]{0}', space=vmem, size = 0x2000, scoped, tag = 'input window, operand 4, single buffered']
    #allocation13 [shape = 'u8[8192]{0}', space=vmem, size = 0x2000, scoped, tag = 'output window, operand 0']
    %11 = vsyncpa [#allocation5], 0
    %s12 = scalar_lea.sflag [#allocation5], 1
    %13 = vsyncpa %s12, 0
    %14 = vsyncpa [#allocation8], 0
    %15 = vsyncpa [#allocation11], 0
    %16 = vsyncpa [#allocation6], 0
    %s17 = scalar_lea.sflag [#allocation6], 1
    %18 = vsyncpa %s17, 0
    loop: start=0, step=1, limit=4
    $region2: #{tpu_custom_call.1} parent=1 // loop_pre_header
      _
    $region3: #{tpu_custom_call.1} parent=1 // loop_header
      %s20 = sphi 0, %s24
      %p21 = scmp.ge.s32.totalorder %s20, 4
      %s27 = sphi 0, %s39
      %s28 = sphi 0, %s35
      %s29 = sphi 0, %s27
      %s30 = sphi 0, %s28
      %s31 = sphi 0, %s29
      %s32 = sphi 0, %s30
      %s44 = sphi 0, %s46
      %s47 = sphi 0, %s44
      %s48 = sphi 0, %s47
      %s64 = sphi 0, %s48
      %s70 = sphi 0, %s72
      %s73 = sphi 0, %s70
      %s74 = sphi 0, %s73
      %s90 = sphi 0, %s74
      %s94 = sphi 0, %s94
      %s96 = sphi 0, %s94
      %s97 = sphi 0, %s96
      %s111 = sphi 0, %s97
      %s115 = sphi 0, %s115
      %s117 = sphi 0, %s115
      %s118 = sphi 0, %s117
      %s132 = sphi 0, %s118
      %s136 = sphi 0, %s136
      %s138 = sphi 0, %s136
      %s139 = sphi 0, %s138
      %s153 = sphi 0, %s139
      %s157 = sphi 0, %s157
      %s159 = sphi 0, %s157
      %s160 = sphi 0, %s159
      %s174 = sphi 0, %s160
      %s182 = sphi 0, %s184
      %s185 = sphi 0, %s182
      %s186 = sphi 0, %s185
      %s202 = sphi 0, %s186
    $region4: #{tpu_custom_call.1} parent=1 // loop_header_branch
      %23 = sbr.rel (%p21) target = $region8
    $region5: #{tpu_custom_call.1} parent=1 // loop_body
      %s25 = ssub.s32 %s20, 1
      %s26 = ssub.s32 %s20, 2
      %s33 = sadd.s32 1, %s28
      %p34 = scmp.ge.s32.totalorder %s33, 1
      %s35 = scalar_select %p34, 0, %s33
      %s36 = sadd.s32 1, %s27
      %s37 = scalar_select %p34, %s36, %s27
      %p38 = scmp.ge.s32.totalorder %s37, 2
      %s39 = scalar_select %p38, 0, %s37
      %s40 = ssub.s32 %s27, %s39
      %s41 = ssub.s32 %s28, %s35
      %s42 = sor.u32 %s40, %s41
      %p43 = scmp.eq.s32.totalorder %s42, 0
      %s45 = sadd.s32 %s44, 1
      %s46 = scalar_select %p43, %s44, %s45
      %p49 = pneg %p43
      %p50 = scmp.eq.s32.totalorder %s20, 1
      %p51 = por %p49, %p50
      %p52 = scmp.ne.s32.totalorder %s44, %s47
      %p53 = scmp.eq.s32.totalorder %s20, 0
      %p54 = por %p52, %p53
      %p55 = scmp.ne.s32.totalorder %s44, %s47
      %p56 = scmp.eq.s32.totalorder %s25, 1
      %p57 = por %p55, %p56
      %p58 = scmp.ne.s32.totalorder %s47, %s48
      %p59 = scmp.eq.s32.totalorder %s25, 0
      %p60 = por %p58, %p59
      %p61 = scmp.ne.s32.totalorder %s47, %s48
      %p62 = scmp.eq.s32.totalorder %s26, 1
      %p63 = por %p61, %p62
      %p65 = scmp.ne.s32.totalorder %s48, %s64
      %p66 = scmp.eq.s32.totalorder %s26, 0
      %p67 = por %p65, %p66
      %s68 = ssub.s32 %s27, %s39
      %p69 = scmp.eq.s32.totalorder %s68, 0
      %s71 = sadd.s32 %s70, 1
      %s72 = scalar_select %p69, %s70, %s71
      %p75 = pneg %p69
      %p76 = scmp.eq.s32.totalorder %s20, 1
      %p77 = por %p75, %p76
      %p78 = scmp.ne.s32.totalorder %s70, %s73
      %p79 = scmp.eq.s32.totalorder %s20, 0
      %p80 = por %p78, %p79
      %p81 = scmp.ne.s32.totalorder %s70, %s73
      %p82 = scmp.eq.s32.totalorder %s25, 1
      %p83 = por %p81, %p82
      %p84 = scmp.ne.s32.totalorder %s73, %s74
      %p85 = scmp.eq.s32.totalorder %s25, 0
      %p86 = por %p84, %p85
      %p87 = scmp.ne.s32.totalorder %s73, %s74
      %p88 = scmp.eq.s32.totalorder %s26, 1
      %p89 = por %p87, %p88
      %p91 = scmp.ne.s32.totalorder %s74, %s90
      %p92 = scmp.eq.s32.totalorder %s26, 0
      %p93 = por %p91, %p92
      %s95 = sadd.s32 %s94, 1
      %p98 = scmp.eq.s32.totalorder %s20, 1
      %p99 = scmp.ne.s32.totalorder %s94, %s96
      %p100 = scmp.eq.s32.totalorder %s20, 0
      %p101 = por %p99, %p100
      %p102 = scmp.ne.s32.totalorder %s94, %s96
      %p103 = scmp.eq.s32.totalorder %s25, 1
      %p104 = por %p102, %p103
      %p105 = scmp.ne.s32.totalorder %s96, %s97
      %p106 = scmp.eq.s32.totalorder %s25, 0
      %p107 = por %p105, %p106
      %p108 = scmp.ne.s32.totalorder %s96, %s97
      %p109 = scmp.eq.s32.totalorder %s26, 1
      %p110 = por %p108, %p109
      %p112 = scmp.ne.s32.totalorder %s97, %s111
      %p113 = scmp.eq.s32.totalorder %s26, 0
      %p114 = por %p112, %p113
      %s116 = sadd.s32 %s115, 1
      %p119 = scmp.eq.s32.totalorder %s20, 1
      %p120 = scmp.ne.s32.totalorder %s115, %s117
      %p121 = scmp.eq.s32.totalorder %s20, 0
      %p122 = por %p120, %p121
      %p123 = scmp.ne.s32.totalorder %s115, %s117
      %p124 = scmp.eq.s32.totalorder %s25, 1
      %p125 = por %p123, %p124
      %p126 = scmp.ne.s32.totalorder %s117, %s118
      %p127 = scmp.eq.s32.totalorder %s25, 0
      %p128 = por %p126, %p127
      %p129 = scmp.ne.s32.totalorder %s117, %s118
      %p130 = scmp.eq.s32.totalorder %s26, 1
      %p131 = por %p129, %p130
      %p133 = scmp.ne.s32.totalorder %s118, %s132
      %p134 = scmp.eq.s32.totalorder %s26, 0
      %p135 = por %p133, %p134
      %s137 = sadd.s32 %s136, 1
      %p140 = scmp.eq.s32.totalorder %s20, 1
      %p141 = scmp.ne.s32.totalorder %s136, %s138
      %p142 = scmp.eq.s32.totalorder %s20, 0
      %p143 = por %p141, %p142
      %p144 = scmp.ne.s32.totalorder %s136, %s138
      %p145 = scmp.eq.s32.totalorder %s25, 1
      %p146 = por %p144, %p145
      %p147 = scmp.ne.s32.totalorder %s138, %s139
      %p148 = scmp.eq.s32.totalorder %s25, 0
      %p149 = por %p147, %p148
      %p150 = scmp.ne.s32.totalorder %s138, %s139
      %p151 = scmp.eq.s32.totalorder %s26, 1
      %p152 = por %p150, %p151
      %p154 = scmp.ne.s32.totalorder %s139, %s153
      %p155 = scmp.eq.s32.totalorder %s26, 0
      %p156 = por %p154, %p155
      %s158 = sadd.s32 %s157, 1
      %p161 = scmp.eq.s32.totalorder %s20, 1
      %p162 = scmp.ne.s32.totalorder %s157, %s159
      %p163 = scmp.eq.s32.totalorder %s20, 0
      %p164 = por %p162, %p163
      %p165 = scmp.ne.s32.totalorder %s157, %s159
      %p166 = scmp.eq.s32.totalorder %s25, 1
      %p167 = por %p165, %p166
      %p168 = scmp.ne.s32.totalorder %s159, %s160
      %p169 = scmp.eq.s32.totalorder %s25, 0
      %p170 = por %p168, %p169
      %p171 = scmp.ne.s32.totalorder %s159, %s160
      %p172 = scmp.eq.s32.totalorder %s26, 1
      %p173 = por %p171, %p172
      %p175 = scmp.ne.s32.totalorder %s160, %s174
      %p176 = scmp.eq.s32.totalorder %s26, 0
      %p177 = por %p175, %p176
      %s178 = ssub.s32 %s27, %s39
      %s179 = ssub.s32 %s28, %s35
      %s180 = sor.u32 %s178, %s179
      %p181 = scmp.eq.s32.totalorder %s180, 0
      %s183 = sadd.s32 %s182, 1
      %s184 = scalar_select %p181, %s182, %s183
      %p187 = pneg %p181
      %p188 = scmp.eq.s32.totalorder %s20, 1
      %p189 = por %p187, %p188
      %p190 = scmp.ne.s32.totalorder %s182, %s185
      %p191 = scmp.eq.s32.totalorder %s20, 0
      %p192 = por %p190, %p191
      %p193 = scmp.ne.s32.totalorder %s182, %s185
      %p194 = scmp.eq.s32.totalorder %s25, 1
      %p195 = por %p193, %p194
      %p196 = scmp.ne.s32.totalorder %s185, %s186
      %p197 = scmp.eq.s32.totalorder %s25, 0
      %p198 = por %p196, %p197
      %p199 = scmp.ne.s32.totalorder %s185, %s186
      %p200 = scmp.eq.s32.totalorder %s26, 1
      %p201 = por %p199, %p200
      %p203 = scmp.ne.s32.totalorder %s186, %s202
      %p204 = scmp.eq.s32.totalorder %s26, 0
      %p205 = por %p203, %p204
      %p206 = scmp.le.s32.totalorder 1, %s20
      %p207 = scmp.lt.s32.totalorder %s20, 3
      %p208 = pnand %p206, %p207
      %p209 = pneg %p208
      // Predicated region
      $region9: #{tpu_custom_call.1} parent=5 // pred_check
        _
      $region10: #{tpu_custom_call.1} parent=5 // pred_check_branch
        %211 = sbr.rel (%p208) target = $region12
      $region11: #{tpu_custom_call.1} parent=5 // pred_region
        %s212 = ssub.s32 %s20, 1
        // Predicated region
        $region13: #{tpu_custom_call.1} parent=11 // pred_check
          %p213 = pneg %p86
        $region14: #{tpu_custom_call.1} parent=11 // pred_check_branch
          %215 = sbr.rel (%p213) target = $region16
        $region15: #{tpu_custom_call.1} parent=11 // pred_region
          %s217 = ssub.s32 64, 64
          %218 = vsyncadd [#allocation8], %s217
          %s219 = smul.addr %s29, 64
          %s220 = scalar_lea.hbm %s1, %s219
          %s222 = sshll.u32 [#allocation7], 4
          %s223 = int_to_ptr.vmem [resolvable:$true] %s222
          %225 = dma.hbm_to_vmem [thread:$0]  %s220, 64, %s223, [#allocation8]
        $region16: #{tpu_custom_call.1} parent=11 // pred_fallthru
          _
        // Predicated region
        $region17: #{tpu_custom_call.1} parent=11 // pred_check
          %p226 = pneg %p107
        $region18: #{tpu_custom_call.1} parent=11 // pred_check_branch
          %228 = sbr.rel (%p226) target = $region20
        $region19: #{tpu_custom_call.1} parent=11 // pred_region
          %s230 = ssub.s32 256, 256
          %231 = vsyncadd [#allocation8], %s230
          %s232 = sshll.u32 [#allocation9], 4
          %s233 = int_to_ptr.vmem [resolvable:$true] %s232
          %238 = dma.hbm_to_vmem [thread:$0]  %s2, 256, %s233, [#allocation8], 64, 64, 4
        $region20: #{tpu_custom_call.1} parent=11 // pred_fallthru
          _
        // Predicated region
        $region21: #{tpu_custom_call.1} parent=11 // pred_check
          %p239 = pneg %p128
        $region22: #{tpu_custom_call.1} parent=11 // pred_check_branch
          %241 = sbr.rel (%p239) target = $region24
        $region23: #{tpu_custom_call.1} parent=11 // pred_region
          %s243 = ssub.s32 256, 256
          %244 = vsyncadd [#allocation11], %s243
          %s245 = sshll.u32 [#allocation10], 4
          %s246 = int_to_ptr.vmem [resolvable:$true] %s245
          %251 = dma.hbm_to_vmem [thread:$0]  %s3, 256, %s246, [#allocation11], 64, 64, 4
        $region24: #{tpu_custom_call.1} parent=11 // pred_fallthru
          _
        // Predicated region
        $region25: #{tpu_custom_call.1} parent=11 // pred_check
          %p252 = pneg %p149
        $region26: #{tpu_custom_call.1} parent=11 // pred_check_branch
          %254 = sbr.rel (%p252) target = $region28
        $region27: #{tpu_custom_call.1} parent=11 // pred_region
          %s256 = ssub.s32 256, 256
          %257 = vsyncadd [#allocation11], %s256
          %s258 = sshll.u32 [#allocation12], 4
          %s259 = int_to_ptr.vmem [resolvable:$true] %s258
          %264 = dma.hbm_to_vmem [thread:$0]  %s4, 256, %s259, [#allocation11], 64, 64, 4
        $region28: #{tpu_custom_call.1} parent=11 // pred_fallthru
          _
        // Predicated region
        $region29: #{tpu_custom_call.1} parent=11 // pred_check
          %p265 = pneg %p170
        $region30: #{tpu_custom_call.1} parent=11 // pred_check_branch
          %267 = sbr.rel (%p265) target = $region32
        $region31: #{tpu_custom_call.1} parent=11 // pred_region
          _
        $region32: #{tpu_custom_call.1} parent=11 // pred_fallthru
          _
      $region12: #{tpu_custom_call.1} parent=5 // pred_fallthru
        _
      %p268 = scmp.lt.s32.totalorder %s20, 2
      // Predicated region
      $region33: #{tpu_custom_call.1} parent=5 // pred_check
        %p269 = pneg %p268
      $region34: #{tpu_custom_call.1} parent=5 // pred_check_branch
        %271 = sbr.rel (%p269) target = $region36
      $region35: #{tpu_custom_call.1} parent=5 // pred_region
        // Predicated region
        $region37: #{tpu_custom_call.1} parent=35 // pred_check
          %p272 = pneg %p54
        $region38: #{tpu_custom_call.1} parent=35 // pred_check_branch
          %274 = sbr.rel (%p272) target = $region40
        $region39: #{tpu_custom_call.1} parent=35 // pred_region
          %s275 = sand.u32 %s44, 1
          %s276 = scalar_lea.sflag [#allocation5], %s275
          %s277 = sand.u32 %s44, 1
          %s278 = smul.addr %s277, 4
          %s279 = scalar_lea.vmem [#allocation4], %s278
          %s281 = ssub.s32 64, 64
          %282 = vsyncadd %s276, %s281
          %s283 = sadd.s32 %s28, %s27
          %s284 = smul.addr %s283, 64
          %s285 = scalar_lea.hbm %s0, %s284
          %s287 = sshll.u32 %s279, 4
          %s288 = int_to_ptr.vmem [resolvable:$true] %s287
          %290 = dma.hbm_to_vmem [thread:$0]  %s285, 64, %s288, %s276
        $region40: #{tpu_custom_call.1} parent=35 // pred_fallthru
          _
      $region36: #{tpu_custom_call.1} parent=5 // pred_fallthru
        _
      %p291 = scmp.le.s32.totalorder 1, %s20
      %p292 = scmp.lt.s32.totalorder %s20, 3
      %p293 = pnand %p291, %p292
      %p294 = pneg %p293
      // Predicated region
      $region41: #{tpu_custom_call.1} parent=5 // pred_check
        _
      $region42: #{tpu_custom_call.1} parent=5 // pred_check_branch
        %296 = sbr.rel (%p293) target = $region44
      $region43: #{tpu_custom_call.1} parent=5 // pred_region
        %s297 = ssub.s32 %s20, 1
        %s298 = sand.u32 %s47, 1
        %s299 = scalar_lea.sflag [#allocation5], %s298
        %s300 = sand.u32 %s47, 1
        %s301 = smul.addr %s300, 4
        %s302 = scalar_lea.vmem [#allocation4], %s301
        // Predicated region
        $region45: #{tpu_custom_call.1} parent=43 // pred_check
          %p303 = pneg %p60
        $region46: #{tpu_custom_call.1} parent=43 // pred_check_branch
          %305 = sbr.rel (%p303) target = $region48
        $region47: #{tpu_custom_call.1} parent=43 // pred_region
          %306 = dma.done %s299, 64
        $region48: #{tpu_custom_call.1} parent=43 // pred_fallthru
          _
        // Predicated region
        $region49: #{tpu_custom_call.1} parent=43 // pred_check
          %p307 = pneg %p86
        $region50: #{tpu_custom_call.1} parent=43 // pred_check_branch
          %309 = sbr.rel (%p307) target = $region52
        $region51: #{tpu_custom_call.1} parent=43 // pred_region
          %310 = dma.done [#allocation8], 64
        $region52: #{tpu_custom_call.1} parent=43 // pred_fallthru
          _
        // Predicated region
        $region53: #{tpu_custom_call.1} parent=43 // pred_check
          %p311 = pneg %p107
        $region54: #{tpu_custom_call.1} parent=43 // pred_check_branch
          %313 = sbr.rel (%p311) target = $region56
        $region55: #{tpu_custom_call.1} parent=43 // pred_region
          %314 = dma.done [#allocation8], 256
        $region56: #{tpu_custom_call.1} parent=43 // pred_fallthru
          _
        // Predicated region
        $region57: #{tpu_custom_call.1} parent=43 // pred_check
          %p315 = pneg %p128
        $region58: #{tpu_custom_call.1} parent=43 // pred_check_branch
          %317 = sbr.rel (%p315) target = $region60
        $region59: #{tpu_custom_call.1} parent=43 // pred_region
          %318 = dma.done [#allocation11], 256
        $region60: #{tpu_custom_call.1} parent=43 // pred_fallthru
          _
        // Predicated region
        $region61: #{tpu_custom_call.1} parent=43 // pred_check
          %p319 = pneg %p149
        $region62: #{tpu_custom_call.1} parent=43 // pred_check_branch
          %321 = sbr.rel (%p319) target = $region64
        $region63: #{tpu_custom_call.1} parent=43 // pred_region
          %322 = dma.done [#allocation11], 256
        $region64: #{tpu_custom_call.1} parent=43 // pred_fallthru
          _
        %s323 = sand.u32 %s47, 1
        %s324 = scalar_lea.sflag [#allocation5], %s323
        %s325 = sand.u32 %s47, 1
        %s326 = smul.addr %s325, 4
        %s327 = scalar_lea.vmem [#allocation4], %s326
        %p328 = pneg %p60
        %p329 = pneg %p57
        %p330 = pneg %p86
        %p331 = pneg %p83
        %p332 = pneg %p107
        %p333 = pneg %p104
        %p334 = pneg %p128
        %p335 = pneg %p125
        %p336 = pneg %p149
        %p337 = pneg %p146
        %p338 = pneg %p170
        %p339 = pneg %p167
        %p340 = pneg %p198
        %p341 = pneg %p195
        %s342 = sand.u32 %s185, 1
        %s343 = scalar_lea.sflag [#allocation6], %s342
        %s344 = sand.u32 %s185, 1
        %s345 = smul.addr %s344, 8
        %s346 = scalar_lea.vmem [#allocation13], %s345
        %p348 = scmp.eq.s32.totalorder %s30, 0
        // Predicated region
        $region65: #{tpu_custom_call.1} parent=43 // pred_check
          %p349 = pneg %p348
        $region66: #{tpu_custom_call.1} parent=43 // pred_check_branch
          %351 = sbr.rel (%p349) target = $region68
        $region67: #{tpu_custom_call.1} parent=43 // pred_region
          %v352 = vld [vmem:[#allocation7] sm:$0xf]
          %v353 = vld [vmem:[#allocation10] sm:$0xf]
          %v354 = vld [vmem:[#allocation10 + $0x4] sm:$0xf]
          %v355 = vld [vmem:[#allocation10 + $0x8] sm:$0xf]
          %v356 = vld [vmem:[#allocation10 + $0xc] sm:$0xf]
          %v361 = vunpack.c.l.b16 %v353
          %v362 = vunpack.c.l.b16 %v354
          %v363 = vunpack.c.l.b16 %v355
          %v364 = vunpack.c.l.b16 %v356
          %v365 = vpack.c.b16 %v362, %v361
          %v366 = vpack.c.b16 %v364, %v363
          %vm369 = vcmask 261120
          %v371 = vsel %vm369, %v352, 0
          %373 = vmatprep.subr.bf16.mxu0 0
          %374 = vmatpush1.bf16.msra.mxu0 %v365
          %375 = vmatprep.subr.bf16.mxu0 0
          %376 = vmatpush1.bf16.msra.mxu0 %v366
          %377 = vmatprep.subr.bf16.mxu0 0
          %378 = vmatpush1.bf16.msra.mxu0 0
          %379 = vmatprep.subr.bf16.mxu0 0
          %380 = vmatpush1.bf16.msra.mxu0 0
          %381 = vmatprep.subr.bf16.mxu0 0
          %382 = vmatpush1.bf16.msra.mxu0 0
          %383 = vmatprep.subr.bf16.mxu0 0
          %384 = vmatpush1.bf16.msra.mxu0 0
          %385 = vmatprep.subr.bf16.mxu0 0
          %386 = vmatpush1.bf16.msra.mxu0 0
          %387 = vmatprep.subr.bf16.mxu0 0
          %388 = vmatpush1.bf16.msra.mxu0 0
          %389 = vmatprep.subr.bf16.mxu0 0
          %390 = vmatpush1.bf16.msra.mxu0 0
          %391 = vmatprep.subr.bf16.mxu0 0
          %392 = vmatpush1.bf16.msra.mxu0 0
          %393 = vmatprep.subr.bf16.mxu0 0
          %394 = vmatpush1.bf16.msra.mxu0 0
          %395 = vmatprep.subr.bf16.mxu0 0
          %396 = vmatpush1.bf16.msra.mxu0 0
          %397 = vmatprep.subr.bf16.mxu0 0
          %398 = vmatpush1.bf16.msra.mxu0 0
          %399 = vmatprep.subr.bf16.mxu0 0
          %400 = vmatpush1.bf16.msra.mxu0 0
          %401 = vmatprep.subr.bf16.mxu0 0
          %402 = vmatpush1.bf16.msra.mxu0 0
          %403 = vmatprep.subr.bf16.mxu0 0
          %404 = vmatpush1.bf16.msra.mxu0 0
          %405 = vmatprep.mubr.bf16.mxu0 0
          %406 = vmatmul.mubr.bf16.gmra.mrb[0].mxu0 %v371
          %v407 = vpop.f32.mrb[0].mxu0
          %v408 = vadd.f32 0.0, %v407
          %v409 = vpop.f32.mrb[0].mxu0
          %v410 = vpop.f32.mrb[0].mxu0
          %v411 = vpop.f32.mrb[0].mxu0
          %412 = vdwg.mxu0
          %v413 = vpack.c.bf16 %v408, %v408
          %vm414 = vcmask 519168
          %415 = vst.msk [vmem:[#allocation2] sm:$0xf] %vm414, %v413
        $region68: #{tpu_custom_call.1} parent=43 // pred_fallthru
          _
        %v416 = vld [vmem:[%s302] sm:$0xf]
        %v417 = vld [vmem:[#allocation9] sm:$0xf]
        %v418 = vld [vmem:[#allocation9 + $0x4] sm:$0xf]
        %v419 = vld [vmem:[#allocation9 + $0x8] sm:$0xf]
        %v420 = vld [vmem:[#allocation9 + $0xc] sm:$0xf]
        %v425 = vunpack.c.l.b16 %v417
        %v426 = vunpack.c.l.b16 %v418
        %v427 = vunpack.c.l.b16 %v419
        %v428 = vunpack.c.l.b16 %v420
        %v429 = vpack.c.b16 %v426, %v425
        %v430 = vpack.c.b16 %v428, %v427
        %vm433 = vcmask 261120
        %v435 = vsel %vm433, %v416, 0
        %437 = vmatprep.subr.bf16.mxu0 0
        %438 = vmatpush1.bf16.msra.mxu0 %v429
        %439 = vmatprep.subr.bf16.mxu0 0
        %440 = vmatpush1.bf16.msra.mxu0 %v430
        %441 = vmatprep.subr.bf16.mxu0 0
        %442 = vmatpush1.bf16.msra.mxu0 0
        %443 = vmatprep.subr.bf16.mxu0 0
        %444 = vmatpush1.bf16.msra.mxu0 0
        %445 = vmatprep.subr.bf16.mxu0 0
        %446 = vmatpush1.bf16.msra.mxu0 0
        %447 = vmatprep.subr.bf16.mxu0 0
        %448 = vmatpush1.bf16.msra.mxu0 0
        %449 = vmatprep.subr.bf16.mxu0 0
        %450 = vmatpush1.bf16.msra.mxu0 0
        %451 = vmatprep.subr.bf16.mxu0 0
        %452 = vmatpush1.bf16.msra.mxu0 0
        %453 = vmatprep.subr.bf16.mxu0 0
        %454 = vmatpush1.bf16.msra.mxu0 0
        %455 = vmatprep.subr.bf16.mxu0 0
        %456 = vmatpush1.bf16.msra.mxu0 0
        %457 = vmatprep.subr.bf16.mxu0 0
        %458 = vmatpush1.bf16.msra.mxu0 0
        %459 = vmatprep.subr.bf16.mxu0 0
        %460 = vmatpush1.bf16.msra.mxu0 0
        %461 = vmatprep.subr.bf16.mxu0 0
        %462 = vmatpush1.bf16.msra.mxu0 0
        %463 = vmatprep.subr.bf16.mxu0 0
        %464 = vmatpush1.bf16.msra.mxu0 0
        %465 = vmatprep.subr.bf16.mxu0 0
        %466 = vmatpush1.bf16.msra.mxu0 0
        %467 = vmatprep.subr.bf16.mxu0 0
        %468 = vmatpush1.bf16.msra.mxu0 0
        %469 = vmatprep.mubr.bf16.mxu0 0
        %470 = vmatmul.mubr.bf16.gmra.mrb[0].mxu0 %v435
        %v471 = vpop.f32.mrb[0].mxu0
        %v472 = vadd.f32 0.0, %v471
        %v473 = vpop.f32.mrb[0].mxu0
        %v474 = vpop.f32.mrb[0].mxu0
        %v475 = vpop.f32.mrb[0].mxu0
        %476 = vdwg.mxu0
        %v477 = vmul.f32 %v472, 0.17677669
        %v478 = vpack.c.bf16 %v477, %v477
        %v479 = vld [vmem:[#allocation2] sm:$0xf]
        %vm480 = vcmask 64512
        %v482 = vsel %vm480, %v478, 0
        %v485 = vsel %vm480, %v479, 0
        %487 = vmatprep.subr.bf16.mxu0 0
        %488 = vmatpush1.bf16.xpose.msra.mxu0 %v485
        %489 = vmatprep.subr.bf16.mxu0 0
        %490 = vmatpush1.bf16.xpose.msra.mxu0 0
        %491 = vmatprep.subr.bf16.mxu0 0
        %492 = vmatpush1.bf16.xpose.msra.mxu0 0
        %493 = vmatprep.subr.bf16.mxu0 0
        %494 = vmatpush1.bf16.xpose.msra.mxu0 0
        %495 = vmatprep.subr.bf16.mxu0 0
        %496 = vmatpush1.bf16.xpose.msra.mxu0 0
        %497 = vmatprep.subr.bf16.mxu0 0
        %498 = vmatpush1.bf16.xpose.msra.mxu0 0
        %499 = vmatprep.subr.bf16.mxu0 0
        %500 = vmatpush1.bf16.xpose.msra.mxu0 0
        %501 = vmatprep.subr.bf16.mxu0 0
        %502 = vmatpush1.bf16.xpose.msra.mxu0 0
        %503 = vmatprep.subr.bf16.mxu0 0
        %504 = vmatpush1.bf16.xpose.msra.mxu0 0
        %505 = vmatprep.subr.bf16.mxu0 0
        %506 = vmatpush1.bf16.xpose.msra.mxu0 0
        %507 = vmatprep.subr.bf16.mxu0 0
        %508 = vmatpush1.bf16.xpose.msra.mxu0 0
        %509 = vmatprep.subr.bf16.mxu0 0
        %510 = vmatpush1.bf16.xpose.msra.mxu0 0
        %511 = vmatprep.subr.bf16.mxu0 0
        %512 = vmatpush1.bf16.xpose.msra.mxu0 0
        %513 = vmatprep.subr.bf16.mxu0 0
        %514 = vmatpush1.bf16.xpose.msra.mxu0 0
        %515 = vmatprep.subr.bf16.mxu0 0
        %516 = vmatpush1.bf16.xpose.msra.mxu0 0
        %517 = vmatprep.subr.bf16.mxu0 0
        %518 = vmatpush1.bf16.xpose.msra.mxu0 0
        %519 = vmatprep.mubr.bf16.mxu0 0
        %520 = vmatmul.mubr.bf16.gmra.mrb[0].mxu0 %v482
        %v521 = vpop.f32.mrb[0].mxu0
        %v522 = vadd.f32 0.0, %v521
        %v523 = vpop.f32.mrb[0].mxu0
        %v524 = vpop.f32.mrb[0].mxu0
        %v525 = vpop.f32.mrb[0].mxu0
        %526 = vdwg.mxu0
        %v527 = vsel %vm480, %v522, -inf
        %528 = vmax.xlane.f32.xlu0 %v527
        %v529 = vpop.xlane.xlu0 %528
        %v530 = vsub.f32 -inf, %v529
        %v531 = vmul.f32 %v530, 1.442695
        %v532 = vpow.pop %v531
        %v533 = vsub.f32 %v522, %v529
        %v534 = vmul.f32 %v533, 1.442695
        %v535 = vpow.pop %v534
        %v536 = vmul.f32 %v532, 0.0
        %v537 = vsel %vm480, %v535, 0.0
        %538 = vadd.xlane.f32.xlu0 %v537
        %v539 = vpop.xlane.xlu0 %538
        %v540 = vadd.f32 %v536, %v539
        %v541 = vpack.c.bf16 %v535, %v535
        %v543 = vunpack.c.l.b16 %v479
        %v544 = vpack.c.b16 %v543, %v543
        %545 = vrot.lane.b32.xlu0 %v544, 96
        %v546 = vpop.permute.xlu0 %545
        %v548 = vsel %vm480, %v541, 0
        %vm550 = vcmask 1043456
        %v552 = vsel %vm550, %v546, 0
        %554 = vmatprep.subr.bf16.mxu0 0
        %555 = vmatpush1.bf16.msra.mxu0 %v552
        %556 = vmatprep.subr.bf16.mxu0 0
        %557 = vmatpush1.bf16.msra.mxu0 0
        %558 = vmatprep.subr.bf16.mxu0 0
        %559 = vmatpush1.bf16.msra.mxu0 0
        %560 = vmatprep.subr.bf16.mxu0 0
        %561 = vmatpush1.bf16.msra.mxu0 0
        %562 = vmatprep.subr.bf16.mxu0 0
        %563 = vmatpush1.bf16.msra.mxu0 0
        %564 = vmatprep.subr.bf16.mxu0 0
        %565 = vmatpush1.bf16.msra.mxu0 0
        %566 = vmatprep.subr.bf16.mxu0 0
        %567 = vmatpush1.bf16.msra.mxu0 0
        %568 = vmatprep.subr.bf16.mxu0 0
        %569 = vmatpush1.bf16.msra.mxu0 0
        %570 = vmatprep.subr.bf16.mxu0 0
        %571 = vmatpush1.bf16.msra.mxu0 0
        %572 = vmatprep.subr.bf16.mxu0 0
        %573 = vmatpush1.bf16.msra.mxu0 0
        %574 = vmatprep.subr.bf16.mxu0 0
        %575 = vmatpush1.bf16.msra.mxu0 0
        %576 = vmatprep.subr.bf16.mxu0 0
        %577 = vmatpush1.bf16.msra.mxu0 0
        %578 = vmatprep.subr.bf16.mxu0 0
        %579 = vmatpush1.bf16.msra.mxu0 0
        %580 = vmatprep.subr.bf16.mxu0 0
        %581 = vmatpush1.bf16.msra.mxu0 0
        %582 = vmatprep.subr.bf16.mxu0 0
        %583 = vmatpush1.bf16.msra.mxu0 0
        %584 = vmatprep.subr.bf16.mxu0 0
        %585 = vmatpush1.bf16.msra.mxu0 0
        %586 = vmatprep.mubr.bf16.mxu0 0
        %587 = vmatmul.mubr.bf16.gmra.mrb[0].mxu0 %v548
        %v588 = vpop.f32.mrb[0].mxu0
        %v589 = vadd.f32 0.0, %v588
        %v590 = vpop.f32.mrb[0].mxu0
        %v591 = vpop.f32.mrb[0].mxu0
        %v592 = vpop.f32.mrb[0].mxu0
        %593 = vdwg.mxu0
        %v594 = vadd.f32 %v536, %v589
        %v595 = vrcp.pop %v540
        %v596 = vmul.f32 %v594, %v595
        %v597 = vpack.c.bf16 %v596, %v596
        %vm598 = vcmask 60416
        %599 = vst.msk [vmem:[#allocation3] sm:$0xf] %vm598, %v597
        %v600 = vld [vmem:[#allocation2] sm:$0xf]
        %602 = vrot.lane.b32.xlu0 %v478, 120
        %v603 = vpop.permute.xlu0 %602
        %v605 = vunpack.c.l.b16 %v600
        %v606 = vpack.c.b16 %v605, %v605
        %607 = vrot.lane.b32.xlu0 %v606, 120
        %v608 = vpop.permute.xlu0 %607
        %v610 = vsel %vm480, %v603, 0
        %v613 = vsel %vm480, %v608, 0
        %615 = vmatprep.subr.bf16.mxu0 0
        %616 = vmatpush1.bf16.xpose.msra.mxu0 %v613
        %617 = vmatprep.subr.bf16.mxu0 0
        %618 = vmatpush1.bf16.xpose.msra.mxu0 0
        %619 = vmatprep.subr.bf16.mxu0 0
        %620 = vmatpush1.bf16.xpose.msra.mxu0 0
        %621 = vmatprep.subr.bf16.mxu0 0
        %622 = vmatpush1.bf16.xpose.msra.mxu0 0
        %623 = vmatprep.subr.bf16.mxu0 0
        %624 = vmatpush1.bf16.xpose.msra.mxu0 0
        %625 = vmatprep.subr.bf16.mxu0 0
        %626 = vmatpush1.bf16.xpose.msra.mxu0 0
        %627 = vmatprep.subr.bf16.mxu0 0
        %628 = vmatpush1.bf16.xpose.msra.mxu0 0
        %629 = vmatprep.subr.bf16.mxu0 0
        %630 = vmatpush1.bf16.xpose.msra.mxu0 0
        %631 = vmatprep.subr.bf16.mxu0 0
        %632 = vmatpush1.bf16.xpose.msra.mxu0 0
        %633 = vmatprep.subr.bf16.mxu0 0
        %634 = vmatpush1.bf16.xpose.msra.mxu0 0
        %635 = vmatprep.subr.bf16.mxu0 0
        %636 = vmatpush1.bf16.xpose.msra.mxu0 0
        %637 = vmatprep.subr.bf16.mxu0 0
        %638 = vmatpush1.bf16.xpose.msra.mxu0 0
        %639 = vmatprep.subr.bf16.mxu0 0
        %640 = vmatpush1.bf16.xpose.msra.mxu0 0
        %641 = vmatprep.subr.bf16.mxu0 0
        %642 = vmatpush1.bf16.xpose.msra.mxu0 0
        %643 = vmatprep.subr.bf16.mxu0 0
        %644 = vmatpush1.bf16.xpose.msra.mxu0 0
        %645 = vmatprep.subr.bf16.mxu0 0
        %646 = vmatpush1.bf16.xpose.msra.mxu0 0
        %647 = vmatprep.mubr.bf16.mxu0 0
        %648 = vmatmul.mubr.bf16.gmra.mrb[0].mxu0 %v610
        %v649 = vpop.f32.mrb[0].mxu0
        %v650 = vadd.f32 0.0, %v649
        %v651 = vpop.f32.mrb[0].mxu0
        %v652 = vpop.f32.mrb[0].mxu0
        %v653 = vpop.f32.mrb[0].mxu0
        %654 = vdwg.mxu0
        %v655 = vsel %vm480, %v650, -inf
        %656 = vmax.xlane.f32.xlu0 %v655
        %v657 = vpop.xlane.xlu0 %656
        %v658 = vsub.f32 -inf, %v657
        %v659 = vmul.f32 %v658, 1.442695
        %v660 = vpow.pop %v659
        %v661 = vsub.f32 %v650, %v657
        %v662 = vmul.f32 %v661, 1.442695
        %v663 = vpow.pop %v662
        %v664 = vmul.f32 %v660, 0.0
        %v665 = vsel %vm480, %v663, 0.0
        %666 = vadd.xlane.f32.xlu0 %v665
        %v667 = vpop.xlane.xlu0 %666
        %v668 = vadd.f32 %v664, %v667
        %v669 = vpack.c.bf16 %v663, %v663
        %670 = vrot.lane.b32.xlu0 %v606, 88
        %v671 = vpop.permute.xlu0 %670
        %v673 = vsel %vm480, %v669, 0
        %v676 = vsel %vm550, %v671, 0
        %678 = vmatprep.subr.bf16.mxu0 0
        %679 = vmatpush1.bf16.msra.mxu0 %v676
        %680 = vmatprep.subr.bf16.mxu0 0
        %681 = vmatpush1.bf16.msra.mxu0 0
        %682 = vmatprep.subr.bf16.mxu0 0
        %683 = vmatpush1.bf16.msra.mxu0 0
        %684 = vmatprep.subr.bf16.mxu0 0
        %685 = vmatpush1.bf16.msra.mxu0 0
        %686 = vmatprep.subr.bf16.mxu0 0
        %687 = vmatpush1.bf16.msra.mxu0 0
        %688 = vmatprep.subr.bf16.mxu0 0
        %689 = vmatpush1.bf16.msra.mxu0 0
        %690 = vmatprep.subr.bf16.mxu0 0
        %691 = vmatpush1.bf16.msra.mxu0 0
        %692 = vmatprep.subr.bf16.mxu0 0
        %693 = vmatpush1.bf16.msra.mxu0 0
        %694 = vmatprep.subr.bf16.mxu0 0
        %695 = vmatpush1.bf16.msra.mxu0 0
        %696 = vmatprep.subr.bf16.mxu0 0
        %697 = vmatpush1.bf16.msra.mxu0 0
        %698 = vmatprep.subr.bf16.mxu0 0
        %699 = vmatpush1.bf16.msra.mxu0 0
        %700 = vmatprep.subr.bf16.mxu0 0
        %701 = vmatpush1.bf16.msra.mxu0 0
        %702 = vmatprep.subr.bf16.mxu0 0
        %703 = vmatpush1.bf16.msra.mxu0 0
        %704 = vmatprep.subr.bf16.mxu0 0
        %705 = vmatpush1.bf16.msra.mxu0 0
        %706 = vmatprep.subr.bf16.mxu0 0
        %707 = vmatpush1.bf16.msra.mxu0 0
        %708 = vmatprep.subr.bf16.mxu0 0
        %709 = vmatpush1.bf16.msra.mxu0 0
        %710 = vmatprep.mubr.bf16.mxu0 0
        %711 = vmatmul.mubr.bf16.gmra.mrb[0].mxu0 %v673
        %v712 = vpop.f32.mrb[0].mxu0
        %v713 = vadd.f32 0.0, %v712
        %v714 = vpop.f32.mrb[0].mxu0
        %v715 = vpop.f32.mrb[0].mxu0
        %v716 = vpop.f32.mrb[0].mxu0
        %717 = vdwg.mxu0
        %v718 = vadd.f32 %v664, %v713
        %v719 = vrcp.pop %v668
        %v720 = vmul.f32 %v718, %v719
        %v721 = vpack.c.bf16 %v720, %v720
        %v723 = vunpack.c.l.b16 %v721
        %v724 = vpack.c.b16 %v723, %v723
        %725 = vrot.lane.b32.xlu0 %v724, 8
        %v726 = vpop.permute.xlu0 %725
        %vm728 = vcmask 126016
        %729 = vst.msk [vmem:[#allocation3] sm:$0xf] %vm728, %v726
        %v730 = vld [vmem:[#allocation2] sm:$0xf]
        %731 = vrot.lane.b32.xlu0 %v478, 112
        %v732 = vpop.permute.xlu0 %731
        %v734 = vunpack.c.l.b16 %v730
        %v735 = vpack.c.b16 %v734, %v734
        %736 = vrot.lane.b32.xlu0 %v735, 112
        %v737 = vpop.permute.xlu0 %736
        %v739 = vsel %vm480, %v732, 0
        %v742 = vsel %vm480, %v737, 0
        %744 = vmatprep.subr.bf16.mxu0 0
        %745 = vmatpush1.bf16.xpose.msra.mxu0 %v742
        %746 = vmatprep.subr.bf16.mxu0 0
        %747 = vmatpush1.bf16.xpose.msra.mxu0 0
        %748 = vmatprep.subr.bf16.mxu0 0
        %749 = vmatpush1.bf16.xpose.msra.mxu0 0
        %750 = vmatprep.subr.bf16.mxu0 0
        %751 = vmatpush1.bf16.xpose.msra.mxu0 0
        %752 = vmatprep.subr.bf16.mxu0 0
        %753 = vmatpush1.bf16.xpose.msra.mxu0 0
        %754 = vmatprep.subr.bf16.mxu0 0
        %755 = vmatpush1.bf16.xpose.msra.mxu0 0
        %756 = vmatprep.subr.bf16.mxu0 0
        %757 = vmatpush1.bf16.xpose.msra.mxu0 0
        %758 = vmatprep.subr.bf16.mxu0 0
        %759 = vmatpush1.bf16.xpose.msra.mxu0 0
        %760 = vmatprep.subr.bf16.mxu0 0
        %761 = vmatpush1.bf16.xpose.msra.mxu0 0
        %762 = vmatprep.subr.bf16.mxu0 0
        %763 = vmatpush1.bf16.xpose.msra.mxu0 0
        %764 = vmatprep.subr.bf16.mxu0 0
        %765 = vmatpush1.bf16.xpose.msra.mxu0 0
        %766 = vmatprep.subr.bf16.mxu0 0
        %767 = vmatpush1.bf16.xpose.msra.mxu0 0
        %768 = vmatprep.subr.bf16.mxu0 0
        %769 = vmatpush1.bf16.xpose.msra.mxu0 0
        %770 = vmatprep.subr.bf16.mxu0 0
        %771 = vmatpush1.bf16.xpose.msra.mxu0 0
        %772 = vmatprep.subr.bf16.mxu0 0
        %773 = vmatpush1.bf16.xpose.msra.mxu0 0
        %774 = vmatprep.subr.bf16.mxu0 0
        %775 = vmatpush1.bf16.xpose.msra.mxu0 0
        %776 = vmatprep.mubr.bf16.mxu0 0
        %777 = vmatmul.mubr.bf16.gmra.mrb[0].mxu0 %v739
        %v778 = vpop.f32.mrb[0].mxu0
        %v779 = vadd.f32 0.0, %v778
        %v780 = vpop.f32.mrb[0].mxu0
        %v781 = vpop.f32.mrb[0].mxu0
        %v782 = vpop.f32.mrb[0].mxu0
        %783 = vdwg.mxu0
        %v784 = vsel %vm480, %v779, -inf
        %785 = vmax.xlane.f32.xlu0 %v784
        %v786 = vpop.xlane.xlu0 %785
        %v787 = vsub.f32 -inf, %v786
        %v788 = vmul.f32 %v787, 1.442695
        %v789 = vpow.pop %v788
        %v790 = vsub.f32 %v779, %v786
        %v791 = vmul.f32 %v790, 1.442695
        %v792 = vpow.pop %v791
        %v793 = vmul.f32 %v789, 0.0
        %v794 = vsel %vm480, %v792, 0.0
        %795 = vadd.xlane.f32.xlu0 %v794
        %v796 = vpop.xlane.xlu0 %795
        %v797 = vadd.f32 %v793, %v796
        %v798 = vpack.c.bf16 %v792, %v792
        %799 = vrot.lane.b32.xlu0 %v735, 80
        %v800 = vpop.permute.xlu0 %799
        %v802 = vsel %vm480, %v798, 0
        %v805 = vsel %vm550, %v800, 0
        %807 = vmatprep.subr.bf16.mxu0 0
        %808 = vmatpush1.bf16.msra.mxu0 %v805
        %809 = vmatprep.subr.bf16.mxu0 0
        %810 = vmatpush1.bf16.msra.mxu0 0
        %811 = vmatprep.subr.bf16.mxu0 0
        %812 = vmatpush1.bf16.msra.mxu0 0
        %813 = vmatprep.subr.bf16.mxu0 0
        %814 = vmatpush1.bf16.msra.mxu0 0
        %815 = vmatprep.subr.bf16.mxu0 0
        %816 = vmatpush1.bf16.msra.mxu0 0
        %817 = vmatprep.subr.bf16.mxu0 0
        %818 = vmatpush1.bf16.msra.mxu0 0
        %819 = vmatprep.subr.bf16.mxu0 0
        %820 = vmatpush1.bf16.msra.mxu0 0
        %821 = vmatprep.subr.bf16.mxu0 0
        %822 = vmatpush1.bf16.msra.mxu0 0
        %823 = vmatprep.subr.bf16.mxu0 0
        %824 = vmatpush1.bf16.msra.mxu0 0
        %825 = vmatprep.subr.bf16.mxu0 0
        %826 = vmatpush1.bf16.msra.mxu0 0
        %827 = vmatprep.subr.bf16.mxu0 0
        %828 = vmatpush1.bf16.msra.mxu0 0
        %829 = vmatprep.subr.bf16.mxu0 0
        %830 = vmatpush1.bf16.msra.mxu0 0
        %831 = vmatprep.subr.bf16.mxu0 0
        %832 = vmatpush1.bf16.msra.mxu0 0
        %833 = vmatprep.subr.bf16.mxu0 0
        %834 = vmatpush1.bf16.msra.mxu0 0
        %835 = vmatprep.subr.bf16.mxu0 0
        %836 = vmatpush1.bf16.msra.mxu0 0
        %837 = vmatprep.subr.bf16.mxu0 0
        %838 = vmatpush1.bf16.msra.mxu0 0
        %839 = vmatprep.mubr.bf16.mxu0 0
        %840 = vmatmul.mubr.bf16.gmra.mrb[0].mxu0 %v802
        %v841 = vpop.f32.mrb[0].mxu0
        %v842 = vadd.f32 0.0, %v841
        %v843 = vpop.f32.mrb[0].mxu0
        %v844 = vpop.f32.mrb[0].mxu0
        %v845 = vpop.f32.mrb[0].mxu0
        %846 = vdwg.mxu0
        %v847 = vadd.f32 %v793, %v842
        %v848 = vrcp.pop %v797
        %v849 = vmul.f32 %v847, %v848
        %v850 = vpack.c.bf16 %v849, %v849
        %v852 = vunpack.c.l.b16 %v850
        %v853 = vpack.c.b16 %v852, %v852
        %854 = vrot.lane.b32.xlu0 %v853, 16
        %v855 = vpop.permute.xlu0 %854
        %vm857 = vcmask 191616
        %858 = vst.msk [vmem:[#allocation3] sm:$0xf] %vm857, %v855
        %v859 = vld [vmem:[#allocation2] sm:$0xf]
        %860 = vrot.lane.b32.xlu0 %v478, 104
        %v861 = vpop.permute.xlu0 %860
        %v863 = vunpack.c.l.b16 %v859
        %v864 = vpack.c.b16 %v863, %v863
        %865 = vrot.lane.b32.xlu0 %v864, 104
        %v866 = vpop.permute.xlu0 %865
        %v868 = vsel %vm480, %v861, 0
        %v871 = vsel %vm480, %v866, 0
        %873 = vmatprep.subr.bf16.mxu0 0
        %874 = vmatpush1.bf16.xpose.msra.mxu0 %v871
        %875 = vmatprep.subr.bf16.mxu0 0
        %876 = vmatpush1.bf16.xpose.msra.mxu0 0
        %877 = vmatprep.subr.bf16.mxu0 0
        %878 = vmatpush1.bf16.xpose.msra.mxu0 0
        %879 = vmatprep.subr.bf16.mxu0 0
        %880 = vmatpush1.bf16.xpose.msra.mxu0 0
        %881 = vmatprep.subr.bf16.mxu0 0
        %882 = vmatpush1.bf16.xpose.msra.mxu0 0
        %883 = vmatprep.subr.bf16.mxu0 0
        %884 = vmatpush1.bf16.xpose.msra.mxu0 0
        %885 = vmatprep.subr.bf16.mxu0 0
        %886 = vmatpush1.bf16.xpose.msra.mxu0 0
        %887 = vmatprep.subr.bf16.mxu0 0
        %888 = vmatpush1.bf16.xpose.msra.mxu0 0
        %889 = vmatprep.subr.bf16.mxu0 0
        %890 = vmatpush1.bf16.xpose.msra.mxu0 0
        %891 = vmatprep.subr.bf16.mxu0 0
        %892 = vmatpush1.bf16.xpose.msra.mxu0 0
        %893 = vmatprep.subr.bf16.mxu0 0
        %894 = vmatpush1.bf16.xpose.msra.mxu0 0
        %895 = vmatprep.subr.bf16.mxu0 0
        %896 = vmatpush1.bf16.xpose.msra.mxu0 0
        %897 = vmatprep.subr.bf16.mxu0 0
        %898 = vmatpush1.bf16.xpose.msra.mxu0 0
        %899 = vmatprep.subr.bf16.mxu0 0
        %900 = vmatpush1.bf16.xpose.msra.mxu0 0
        %901 = vmatprep.subr.bf16.mxu0 0
        %902 = vmatpush1.bf16.xpose.msra.mxu0 0
        %903 = vmatprep.subr.bf16.mxu0 0
        %904 = vmatpush1.bf16.xpose.msra.mxu0 0
        %905 = vmatprep.mubr.bf16.mxu0 0
        %906 = vmatmul.mubr.bf16.gmra.mrb[0].mxu0 %v868
        %v907 = vpop.f32.mrb[0].mxu0
        %v908 = vadd.f32 0.0, %v907
        %v909 = vpop.f32.mrb[0].mxu0
        %v910 = vpop.f32.mrb[0].mxu0
        %v911 = vpop.f32.mrb[0].mxu0
        %912 = vdwg.mxu0
        %v913 = vsel %vm480, %v908, -inf
        %914 = vmax.xlane.f32.xlu0 %v913
        %v915 = vpop.xlane.xlu0 %914
        %v916 = vsub.f32 -inf, %v915
        %v917 = vmul.f32 %v916, 1.442695
        %v918 = vpow.pop %v917
        %v919 = vsub.f32 %v908, %v915
        %v920 = vmul.f32 %v919, 1.442695
        %v921 = vpow.pop %v920
        %v922 = vmul.f32 %v918, 0.0
        %v923 = vsel %vm480, %v921, 0.0
        %924 = vadd.xlane.f32.xlu0 %v923
        %v925 = vpop.xlane.xlu0 %924
        %v926 = vadd.f32 %v922, %v925
        %v927 = vpack.c.bf16 %v921, %v921
        %928 = vrot.lane.b32.xlu0 %v864, 72
        %v929 = vpop.permute.xlu0 %928
        %v931 = vsel %vm480, %v927, 0
        %v934 = vsel %vm550, %v929, 0
        %936 = vmatprep.subr.bf16.mxu0 0
        %937 = vmatpush1.bf16.msra.mxu0 %v934
        %938 = vmatprep.subr.bf16.mxu0 0
        %939 = vmatpush1.bf16.msra.mxu0 0
        %940 = vmatprep.subr.bf16.mxu0 0
        %941 = vmatpush1.bf16.msra.mxu0 0
        %942 = vmatprep.subr.bf16.mxu0 0
        %943 = vmatpush1.bf16.msra.mxu0 0
        %944 = vmatprep.subr.bf16.mxu0 0
        %945 = vmatpush1.bf16.msra.mxu0 0
        %946 = vmatprep.subr.bf16.mxu0 0
        %947 = vmatpush1.bf16.msra.mxu0 0
        %948 = vmatprep.subr.bf16.mxu0 0
        %949 = vmatpush1.bf16.msra.mxu0 0
        %950 = vmatprep.subr.bf16.mxu0 0
        %951 = vmatpush1.bf16.msra.mxu0 0
        %952 = vmatprep.subr.bf16.mxu0 0
        %953 = vmatpush1.bf16.msra.mxu0 0
        %954 = vmatprep.subr.bf16.mxu0 0
        %955 = vmatpush1.bf16.msra.mxu0 0
        %956 = vmatprep.subr.bf16.mxu0 0
        %957 = vmatpush1.bf16.msra.mxu0 0
        %958 = vmatprep.subr.bf16.mxu0 0
        %959 = vmatpush1.bf16.msra.mxu0 0
        %960 = vmatprep.subr.bf16.mxu0 0
        %961 = vmatpush1.bf16.msra.mxu0 0
        %962 = vmatprep.subr.bf16.mxu0 0
        %963 = vmatpush1.bf16.msra.mxu0 0
        %964 = vmatprep.subr.bf16.mxu0 0
        %965 = vmatpush1.bf16.msra.mxu0 0
        %966 = vmatprep.subr.bf16.mxu0 0
        %967 = vmatpush1.bf16.msra.mxu0 0
        %968 = vmatprep.mubr.bf16.mxu0 0
        %969 = vmatmul.mubr.bf16.gmra.mrb[0].mxu0 %v931
        %v970 = vpop.f32.mrb[0].mxu0
        %v971 = vadd.f32 0.0, %v970
        %v972 = vpop.f32.mrb[0].mxu0
        %v973 = vpop.f32.mrb[0].mxu0
        %v974 = vpop.f32.mrb[0].mxu0
        %975 = vdwg.mxu0
        %v976 = vadd.f32 %v922, %v971
        %v977 = vrcp.pop %v926
        %v978 = vmul.f32 %v976, %v977
        %v979 = vpack.c.bf16 %v978, %v978
        %v981 = vunpack.c.l.b16 %v979
        %v982 = vpack.c.b16 %v981, %v981
        %983 = vrot.lane.b32.xlu0 %v982, 24
        %v984 = vpop.permute.xlu0 %983
        %vm986 = vcmask 257216
        %987 = vst.msk [vmem:[#allocation3] sm:$0xf] %vm986, %v984
        %v988 = vld [vmem:[#allocation3] sm:$0xf]
        %v989 = vld [vmem:[#allocation12] sm:$0xf]
        %v990 = vld [vmem:[#allocation12 + $0x4] sm:$0xf]
        %v991 = vld [vmem:[#allocation12 + $0x8] sm:$0xf]
        %v992 = vld [vmem:[#allocation12 + $0xc] sm:$0xf]
        %v993 = vld [vmem:[%s5] sm:$0x1]
        %v995 = vlaneseq
        %v996 = vshrl.u32 %v995, 7
        %v997 = vsub.s32 0, %v996
        %v998 = vrot.slane %v993, %v997
        %v1004 = vunpack.c.l.b16 %v989
        %v1005 = vunpack.c.l.b16 %v990
        %v1006 = vunpack.c.l.b16 %v991
        %v1007 = vunpack.c.l.b16 %v992
        %v1008 = vpack.c.b16 %v1005, %v1004
        %v1009 = vpack.c.b16 %v1007, %v1006
        %v1013 = vsel %vm433, %v988, 0
        %1015 = vmatprep.subr.bf16.mxu0 0
        %1016 = vmatpush1.bf16.msra.mxu0 %v1008
        %1017 = vmatprep.subr.bf16.mxu0 0
        %1018 = vmatpush1.bf16.msra.mxu0 %v1009
        %1019 = vmatprep.subr.bf16.mxu0 0
        %1020 = vmatpush1.bf16.msra.mxu0 0
        %1021 = vmatprep.subr.bf16.mxu0 0
        %1022 = vmatpush1.bf16.msra.mxu0 0
        %1023 = vmatprep.subr.bf16.mxu0 0
        %1024 = vmatpush1.bf16.msra.mxu0 0
        %1025 = vmatprep.subr.bf16.mxu0 0
        %1026 = vmatpush1.bf16.msra.mxu0 0
        %1027 = vmatprep.subr.bf16.mxu0 0
        %1028 = vmatpush1.bf16.msra.mxu0 0
        %1029 = vmatprep.subr.bf16.mxu0 0
        %1030 = vmatpush1.bf16.msra.mxu0 0
        %1031 = vmatprep.subr.bf16.mxu0 0
        %1032 = vmatpush1.bf16.msra.mxu0 0
        %1033 = vmatprep.subr.bf16.mxu0 0
        %1034 = vmatpush1.bf16.msra.mxu0 0
        %1035 = vmatprep.subr.bf16.mxu0 0
        %1036 = vmatpush1.bf16.msra.mxu0 0
        %1037 = vmatprep.subr.bf16.mxu0 0
        %1038 = vmatpush1.bf16.msra.mxu0 0
        %1039 = vmatprep.subr.bf16.mxu0 0
        %1040 = vmatpush1.bf16.msra.mxu0 0
        %1041 = vmatprep.subr.bf16.mxu0 0
        %1042 = vmatpush1.bf16.msra.mxu0 0
        %1043 = vmatprep.subr.bf16.mxu0 0
        %1044 = vmatpush1.bf16.msra.mxu0 0
        %1045 = vmatprep.subr.bf16.mxu0 0
        %1046 = vmatpush1.bf16.msra.mxu0 0
        %1047 = vmatprep.mubr.bf16.mxu0 0
        %1048 = vmatmul.mubr.bf16.gmra.mrb[0].mxu0 %v1013
        %v1049 = vpop.f32.mrb[0].mxu0
        %v1050 = vadd.f32 %v998, %v1049
        %v1051 = vpop.f32.mrb[0].mxu0
        %v1052 = vpop.f32.mrb[0].mxu0
        %v1053 = vpop.f32.mrb[0].mxu0
        %1054 = vdwg.mxu0
        %1055 = vst.msk [vmem:[%s346] sm:$0xff] %vm433, %v1050
        %s1056 = sand.u32 %s185, 1
        %s1057 = scalar_lea.sflag [#allocation6], %s1056
        %s1058 = sand.u32 %s185, 1
        %s1059 = smul.addr %s1058, 8
        %s1060 = scalar_lea.vmem [#allocation13], %s1059
        // Predicated region
        $region69: #{tpu_custom_call.1} parent=43 // pred_check
          %p1061 = pneg %p195
        $region70: #{tpu_custom_call.1} parent=43 // pred_check_branch
          %1063 = sbr.rel (%p1061) target = $region72
        $region71: #{tpu_custom_call.1} parent=43 // pred_region
          %s1065 = ssub.s32 128, 128
          %1066 = vsyncadd %s1057, %s1065
          %s1067 = sadd.s32 %s30, %s29
          %s1068 = smul.addr %s1067, 128
          %s1069 = scalar_lea.hbm %s6, %s1068
          %s1071 = sshll.u32 %s1060, 4
          %s1072 = int_to_ptr.vmem [resolvable:$true] %s1071
          %1074 = dma.vmem_to_hbm [thread:$0]  %s1072, 128, %s1069, %s1057
        $region72: #{tpu_custom_call.1} parent=43 // pred_fallthru
          _
      $region44: #{tpu_custom_call.1} parent=5 // pred_fallthru
        _
      %p1075 = scmp.le.s32.totalorder 2, %s20
      // Predicated region
      $region73: #{tpu_custom_call.1} parent=5 // pred_check
        %p1076 = pneg %p1075
      $region74: #{tpu_custom_call.1} parent=5 // pred_check_branch
        %1078 = sbr.rel (%p1076) target = $region76
      $region75: #{tpu_custom_call.1} parent=5 // pred_region
        %s1079 = ssub.s32 %s20, 2
        // Predicated region
        $region77: #{tpu_custom_call.1} parent=75 // pred_check
          %p1080 = pneg %p201
        $region78: #{tpu_custom_call.1} parent=75 // pred_check_branch
          %1082 = sbr.rel (%p1080) target = $region80
        $region79: #{tpu_custom_call.1} parent=75 // pred_region
          %s1083 = sand.u32 %s186, 1
          %s1084 = scalar_lea.sflag [#allocation6], %s1083
          %s1085 = sand.u32 %s186, 1
          %s1086 = smul.addr %s1085, 8
          %s1087 = scalar_lea.vmem [#allocation13], %s1086
          %1088 = dma.done %s1084, 128
        $region80: #{tpu_custom_call.1} parent=75 // pred_fallthru
          _
      $region76: #{tpu_custom_call.1} parent=5 // pred_fallthru
        _
    $region6: #{tpu_custom_call.1} parent=1 // loop_footer
      %s24 = sadd.s32 1, %s20
    $region7: #{tpu_custom_call.1} parent=1 // loop_footer_branch
      %19 = sbr.rel target = $region3
    $region8: #{tpu_custom_call.1} parent=1 // loop_exit
      _
    %1089 = vsyncpa [#allocation5], 1
    %s1090 = scalar_lea.sflag [#allocation5], 1
    %1091 = vsyncpa %s1090, 1
    %1092 = vsyncpa [#allocation8], 1
    %1093 = vsyncpa [#allocation11], 1
    %1094 = vsyncpa [#allocation6], 1
    %s1095 = scalar_lea.sflag [#allocation6], 1
    %1096 = vsyncpa %s1095, 1

// kernel: tpu_custom_call.1
$region0: #{tpu_custom_call.1}
  #allocation0 [shape = 'u32[]', space=smem, size = 0x4, offset = 0x4, fixed_abs, tag = 'smem constant byte address 0x4 - core index']
  #allocation1 [shape = 'u32[144,128]{1,0:T(1,128)}', space=vmem, size = 0x12000, scoped, tag = 'internal scratch']
  #allocation2 [shape = 'bf16[8,64]{1,0:T(8,128)(2,1)}', space=vmem, size = 0x800, scoped, tag = 'scratch operand']
  #allocation3 [shape = 'bf16[8,32]{1,0:T(8,128)(2,1)}', space=vmem, size = 0x800, scoped, tag = 'scratch operand']
  %s0 = inlined_call_operand.hbm [shape: bf16[2,8,32], index: 0, kind: input, shape index: {}]
  %s1 = inlined_call_operand.hbm [shape: bf16[2,8,32], index: 1, kind: input, shape index: {}]
  %s2 = inlined_call_operand.hbm [shape: bf16[32,32], index: 2, kind: input, shape index: {}]
  %s3 = inlined_call_operand.hbm [shape: bf16[32,64], index: 3, kind: input, shape index: {}]
  %s4 = inlined_call_operand.hbm [shape: bf16[32,32], index: 4, kind: input, shape index: {}]
  %s5 = inlined_call_operand.vmem [shape: f32[1,32], index: 5, kind: input, shape index: {}]
  %s6 = inlined_call_operand.hbm [shape: f32[2,8,32], index: 6, kind: output, shape index: {}]
  %s7 = sld [smem:[#allocation0]]
  $region81: #{tpu_custom_call.1} parent=0
    _
  %s9 = ssub.s32 1, %s7
  %s10 = scalar_select 0, %s9, %s7
  $region1: #{tpu_custom_call.1} parent=0
    #allocation4 [shape = 'u8[4096]{0}', space=vmem, size = 0x1000, scoped, tag = 'input window, operand 0']
    #allocation5 [shape = 's32[2]{0}', space=sflag, size = 0x8, scoped, tag = 'scoped memory for tpu_custom_call.1']
    #allocation6 [shape = 's32[2]{0}', space=sflag, size = 0x8, scoped, tag = 'scoped memory for tpu_custom_call.1']
    #allocation7 [shape = 'u8[4096]{0}', space=vmem, size = 0x1000, scoped, tag = 'input window, operand 1']
    #allocation8 [shape = 's32[2]{0}', space=sflag, size = 0x8, scoped, tag = 'scoped memory for tpu_custom_call.1']
    #allocation9 [shape = 'u8[8192]{0}', space=vmem, size = 0x2000, scoped, tag = 'input window, operand 2, single buffered']
    #allocation10 [shape = 'u8[8192]{0}', space=vmem, size = 0x2000, scoped, tag = 'input window, operand 3, single buffered']
    #allocation11 [shape = 's32[1]{0}', space=sflag, size = 0x4, scoped, tag = 'scoped memory for tpu_custom_call.1']
    #allocation12 [shape = 'u8[8192]{0}', space=vmem, size = 0x2000, scoped, tag = 'input window, operand 4, single buffered']
    #allocation13 [shape = 'u8[8192]{0}', space=vmem, size = 0x2000, scoped, tag = 'output window, operand 0']
    %11 = vsyncpa [#allocation5], 0
    %s12 = scalar_lea.sflag [#allocation5], 1
    %13 = vsyncpa %s12, 0
    %14 = vsyncpa [#allocation8], 0
    %s15 = scalar_lea.sflag [#allocation8], 1
    %16 = vsyncpa %s15, 0
    %17 = vsyncpa [#allocation11], 0
    %18 = vsyncpa [#allocation6], 0
    %s19 = scalar_lea.sflag [#allocation6], 1
    %20 = vsyncpa %s19, 0
    loop: start=0, step=1, limit=4
    $region2: #{tpu_custom_call.1} parent=1 // loop_pre_header
      _
    $region3: #{tpu_custom_call.1} parent=1 // loop_header
      %s22 = sphi 0, %s26
      %p23 = scmp.ge.s32.totalorder %s22, 4
      %s29 = sphi 0, %s41
      %s30 = sphi 0, %s37
      %s31 = sphi 0, %s29
      %s32 = sphi 0, %s30
      %s33 = sphi 0, %s31
      %s34 = sphi 0, %s32
      %s46 = sphi 0, %s48
      %s49 = sphi 0, %s46
      %s50 = sphi 0, %s49
      %s66 = sphi 0, %s50
      %s72 = sphi 0, %s74
      %s75 = sphi 0, %s72
      %s76 = sphi 0, %s75
      %s92 = sphi 0, %s76
      %s96 = sphi 0, %s96
      %s98 = sphi 0, %s96
      %s99 = sphi 0, %s98
      %s113 = sphi 0, %s99
      %s117 = sphi 0, %s117
      %s119 = sphi 0, %s117
      %s120 = sphi 0, %s119
      %s134 = sphi 0, %s120
      %s138 = sphi 0, %s138
      %s140 = sphi 0, %s138
      %s141 = sphi 0, %s140
      %s155 = sphi 0, %s141
      %s159 = sphi 0, %s159
      %s161 = sphi 0, %s159
      %s162 = sphi 0, %s161
      %s176 = sphi 0, %s162
      %s184 = sphi 0, %s186
      %s187 = sphi 0, %s184
      %s188 = sphi 0, %s187
      %s204 = sphi 0, %s188
    $region4: #{tpu_custom_call.1} parent=1 // loop_header_branch
      %25 = sbr.rel (%p23) target = $region8
    $region5: #{tpu_custom_call.1} parent=1 // loop_body
      %s27 = ssub.s32 %s22, 1
      %s28 = ssub.s32 %s22, 2
      %s35 = sadd.s32 1, %s30
      %p36 = scmp.ge.s32.totalorder %s35, 1
      %s37 = scalar_select %p36, 0, %s35
      %s38 = sadd.s32 1, %s29
      %s39 = scalar_select %p36, %s38, %s29
      %p40 = scmp.ge.s32.totalorder %s39, 2
      %s41 = scalar_select %p40, 0, %s39
      %s42 = ssub.s32 %s29, %s41
      %s43 = ssub.s32 %s30, %s37
      %s44 = sor.u32 %s42, %s43
      %p45 = scmp.eq.s32.totalorder %s44, 0
      %s47 = sadd.s32 %s46, 1
      %s48 = scalar_select %p45, %s46, %s47
      %p51 = pneg %p45
      %p52 = scmp.eq.s32.totalorder %s22, 1
      %p53 = por %p51, %p52
      %p54 = scmp.ne.s32.totalorder %s46, %s49
      %p55 = scmp.eq.s32.totalorder %s22, 0
      %p56 = por %p54, %p55
      %p57 = scmp.ne.s32.totalorder %s46, %s49
      %p58 = scmp.eq.s32.totalorder %s27, 1
      %p59 = por %p57, %p58
      %p60 = scmp.ne.s32.totalorder %s49, %s50
      %p61 = scmp.eq.s32.totalorder %s27, 0
      %p62 = por %p60, %p61
      %p63 = scmp.ne.s32.totalorder %s49, %s50
      %p64 = scmp.eq.s32.totalorder %s28, 1
      %p65 = por %p63, %p64
      %p67 = scmp.ne.s32.totalorder %s50, %s66
      %p68 = scmp.eq.s32.totalorder %s28, 0
      %p69 = por %p67, %p68
      %s70 = ssub.s32 %s29, %s41
      %p71 = scmp.eq.s32.totalorder %s70, 0
      %s73 = sadd.s32 %s72, 1
      %s74 = scalar_select %p71, %s72, %s73
      %p77 = pneg %p71
      %p78 = scmp.eq.s32.totalorder %s22, 1
      %p79 = por %p77, %p78
      %p80 = scmp.ne.s32.totalorder %s72, %s75
      %p81 = scmp.eq.s32.totalorder %s22, 0
      %p82 = por %p80, %p81
      %p83 = scmp.ne.s32.totalorder %s72, %s75
      %p84 = scmp.eq.s32.totalorder %s27, 1
      %p85 = por %p83, %p84
      %p86 = scmp.ne.s32.totalorder %s75, %s76
      %p87 = scmp.eq.s32.totalorder %s27, 0
      %p88 = por %p86, %p87
      %p89 = scmp.ne.s32.totalorder %s75, %s76
      %p90 = scmp.eq.s32.totalorder %s28, 1
      %p91 = por %p89, %p90
      %p93 = scmp.ne.s32.totalorder %s76, %s92
      %p94 = scmp.eq.s32.totalorder %s28, 0
      %p95 = por %p93, %p94
      %s97 = sadd.s32 %s96, 1
      %p100 = scmp.eq.s32.totalorder %s22, 1
      %p101 = scmp.ne.s32.totalorder %s96, %s98
      %p102 = scmp.eq.s32.totalorder %s22, 0
      %p103 = por %p101, %p102
      %p104 = scmp.ne.s32.totalorder %s96, %s98
      %p105 = scmp.eq.s32.totalorder %s27, 1
      %p106 = por %p104, %p105
      %p107 = scmp.ne.s32.totalorder %s98, %s99
      %p108 = scmp.eq.s32.totalorder %s27, 0
      %p109 = por %p107, %p108
      %p110 = scmp.ne.s32.totalorder %s98, %s99
      %p111 = scmp.eq.s32.totalorder %s28, 1
      %p112 = por %p110, %p111
      %p114 = scmp.ne.s32.totalorder %s99, %s113
      %p115 = scmp.eq.s32.totalorder %s28, 0
      %p116 = por %p114, %p115
      %s118 = sadd.s32 %s117, 1
      %p121 = scmp.eq.s32.totalorder %s22, 1
      %p122 = scmp.ne.s32.totalorder %s117, %s119
      %p123 = scmp.eq.s32.totalorder %s22, 0
      %p124 = por %p122, %p123
      %p125 = scmp.ne.s32.totalorder %s117, %s119
      %p126 = scmp.eq.s32.totalorder %s27, 1
      %p127 = por %p125, %p126
      %p128 = scmp.ne.s32.totalorder %s119, %s120
      %p129 = scmp.eq.s32.totalorder %s27, 0
      %p130 = por %p128, %p129
      %p131 = scmp.ne.s32.totalorder %s119, %s120
      %p132 = scmp.eq.s32.totalorder %s28, 1
      %p133 = por %p131, %p132
      %p135 = scmp.ne.s32.totalorder %s120, %s134
      %p136 = scmp.eq.s32.totalorder %s28, 0
      %p137 = por %p135, %p136
      %s139 = sadd.s32 %s138, 1
      %p142 = scmp.eq.s32.totalorder %s22, 1
      %p143 = scmp.ne.s32.totalorder %s138, %s140
      %p144 = scmp.eq.s32.totalorder %s22, 0
      %p145 = por %p143, %p144
      %p146 = scmp.ne.s32.totalorder %s138, %s140
      %p147 = scmp.eq.s32.totalorder %s27, 1
      %p148 = por %p146, %p147
      %p149 = scmp.ne.s32.totalorder %s140, %s141
      %p150 = scmp.eq.s32.totalorder %s27, 0
      %p151 = por %p149, %p150
      %p152 = scmp.ne.s32.totalorder %s140, %s141
      %p153 = scmp.eq.s32.totalorder %s28, 1
      %p154 = por %p152, %p153
      %p156 = scmp.ne.s32.totalorder %s141, %s155
      %p157 = scmp.eq.s32.totalorder %s28, 0
      %p158 = por %p156, %p157
      %s160 = sadd.s32 %s159, 1
      %p163 = scmp.eq.s32.totalorder %s22, 1
      %p164 = scmp.ne.s32.totalorder %s159, %s161
      %p165 = scmp.eq.s32.totalorder %s22, 0
      %p166 = por %p164, %p165
      %p167 = scmp.ne.s32.totalorder %s159, %s161
      %p168 = scmp.eq.s32.totalorder %s27, 1
      %p169 = por %p167, %p168
      %p170 = scmp.ne.s32.totalorder %s161, %s162
      %p171 = scmp.eq.s32.totalorder %s27, 0
      %p172 = por %p170, %p171
      %p173 = scmp.ne.s32.totalorder %s161, %s162
      %p174 = scmp.eq.s32.totalorder %s28, 1
      %p175 = por %p173, %p174
      %p177 = scmp.ne.s32.totalorder %s162, %s176
      %p178 = scmp.eq.s32.totalorder %s28, 0
      %p179 = por %p177, %p178
      %s180 = ssub.s32 %s29, %s41
      %s181 = ssub.s32 %s30, %s37
      %s182 = sor.u32 %s180, %s181
      %p183 = scmp.eq.s32.totalorder %s182, 0
      %s185 = sadd.s32 %s184, 1
      %s186 = scalar_select %p183, %s184, %s185
      %p189 = pneg %p183
      %p190 = scmp.eq.s32.totalorder %s22, 1
      %p191 = por %p189, %p190
      %p192 = scmp.ne.s32.totalorder %s184, %s187
      %p193 = scmp.eq.s32.totalorder %s22, 0
      %p194 = por %p192, %p193
      %p195 = scmp.ne.s32.totalorder %s184, %s187
      %p196 = scmp.eq.s32.totalorder %s27, 1
      %p197 = por %p195, %p196
      %p198 = scmp.ne.s32.totalorder %s187, %s188
      %p199 = scmp.eq.s32.totalorder %s27, 0
      %p200 = por %p198, %p199
      %p201 = scmp.ne.s32.totalorder %s187, %s188
      %p202 = scmp.eq.s32.totalorder %s28, 1
      %p203 = por %p201, %p202
      %p205 = scmp.ne.s32.totalorder %s188, %s204
      %p206 = scmp.eq.s32.totalorder %s28, 0
      %p207 = por %p205, %p206
      %p208 = scmp.le.s32.totalorder 1, %s22
      %p209 = scmp.lt.s32.totalorder %s22, 3
      %p210 = pnand %p208, %p209
      %p211 = pneg %p210
      // Predicated region
      $region9: #{tpu_custom_call.1} parent=5 // pred_check
        _
      $region10: #{tpu_custom_call.1} parent=5 // pred_check_branch
        %213 = sbr.rel (%p210) target = $region12
      $region11: #{tpu_custom_call.1} parent=5 // pred_region
        %s214 = ssub.s32 %s22, 1
        // Predicated region
        $region13: #{tpu_custom_call.1} parent=11 // pred_check
          %p215 = pneg %p109
        $region14: #{tpu_custom_call.1} parent=11 // pred_check_branch
          %217 = sbr.rel (%p215) target = $region16
        $region15: #{tpu_custom_call.1} parent=11 // pred_region
          %s219 = ssub.s32 256, 256
          %220 = vsyncadd [#allocation8], %s219
          %s221 = sshll.u32 [#allocation9], 4
          %s222 = int_to_ptr.vmem [resolvable:$true] %s221
          %227 = dma.hbm_to_vmem [thread:$0]  %s2, 256, %s222, [#allocation8], 64, 64, 4
        $region16: #{tpu_custom_call.1} parent=11 // pred_fallthru
          _
        // Predicated region
        $region17: #{tpu_custom_call.1} parent=11 // pred_check
          %p228 = pneg %p130
        $region18: #{tpu_custom_call.1} parent=11 // pred_check_branch
          %230 = sbr.rel (%p228) target = $region20
        $region19: #{tpu_custom_call.1} parent=11 // pred_region
          %s232 = ssub.s32 256, 256
          %233 = vsyncadd [#allocation11], %s232
          %s234 = sshll.u32 [#allocation10], 4
          %s235 = int_to_ptr.vmem [resolvable:$true] %s234
          %240 = dma.hbm_to_vmem [thread:$0]  %s3, 256, %s235, [#allocation11], 64, 64, 4
        $region20: #{tpu_custom_call.1} parent=11 // pred_fallthru
          _
        // Predicated region
        $region21: #{tpu_custom_call.1} parent=11 // pred_check
          %p241 = pneg %p151
        $region22: #{tpu_custom_call.1} parent=11 // pred_check_branch
          %243 = sbr.rel (%p241) target = $region24
        $region23: #{tpu_custom_call.1} parent=11 // pred_region
          %s245 = ssub.s32 256, 256
          %246 = vsyncadd [#allocation11], %s245
          %s247 = sshll.u32 [#allocation12], 4
          %s248 = int_to_ptr.vmem [resolvable:$true] %s247
          %253 = dma.hbm_to_vmem [thread:$0]  %s4, 256, %s248, [#allocation11], 64, 64, 4
        $region24: #{tpu_custom_call.1} parent=11 // pred_fallthru
          _
        // Predicated region
        $region25: #{tpu_custom_call.1} parent=11 // pred_check
          %p254 = pneg %p172
        $region26: #{tpu_custom_call.1} parent=11 // pred_check_branch
          %256 = sbr.rel (%p254) target = $region28
        $region27: #{tpu_custom_call.1} parent=11 // pred_region
          _
        $region28: #{tpu_custom_call.1} parent=11 // pred_fallthru
          _
      $region12: #{tpu_custom_call.1} parent=5 // pred_fallthru
        _
      %p257 = scmp.lt.s32.totalorder %s22, 2
      // Predicated region
      $region29: #{tpu_custom_call.1} parent=5 // pred_check
        %p258 = pneg %p257
      $region30: #{tpu_custom_call.1} parent=5 // pred_check_branch
        %260 = sbr.rel (%p258) target = $region32
      $region31: #{tpu_custom_call.1} parent=5 // pred_region
        // Predicated region
        $region33: #{tpu_custom_call.1} parent=31 // pred_check
          %p261 = pneg %p56
        $region34: #{tpu_custom_call.1} parent=31 // pred_check_branch
          %263 = sbr.rel (%p261) target = $region36
        $region35: #{tpu_custom_call.1} parent=31 // pred_region
          %s264 = sand.u32 %s46, 1
          %s265 = scalar_lea.sflag [#allocation5], %s264
          %s266 = sand.u32 %s46, 1
          %s267 = smul.addr %s266, 4
          %s268 = scalar_lea.vmem [#allocation4], %s267
          %s270 = ssub.s32 64, 64
          %271 = vsyncadd %s265, %s270
          %s272 = sadd.s32 %s30, %s29
          %s273 = smul.addr %s272, 64
          %s274 = scalar_lea.hbm %s0, %s273
          %s276 = sshll.u32 %s268, 4
          %s277 = int_to_ptr.vmem [resolvable:$true] %s276
          %279 = dma.hbm_to_vmem [thread:$0]  %s274, 64, %s277, %s265
        $region36: #{tpu_custom_call.1} parent=31 // pred_fallthru
          _
        // Predicated region
        $region37: #{tpu_custom_call.1} parent=31 // pred_check
          %p280 = pneg %p82
        $region38: #{tpu_custom_call.1} parent=31 // pred_check_branch
          %282 = sbr.rel (%p280) target = $region40
        $region39: #{tpu_custom_call.1} parent=31 // pred_region
          %s283 = sand.u32 %s22, 1
          %s284 = scalar_lea.sflag [#allocation8], %s283
          %s285 = sand.u32 %s72, 1
          %s286 = smul.addr %s285, 4
          %s287 = scalar_lea.vmem [#allocation7], %s286
          %s289 = ssub.s32 64, 64
          %290 = vsyncadd %s284, %s289
          %s291 = smul.addr %s29, 64
          %s292 = scalar_lea.hbm %s1, %s291
          %s294 = sshll.u32 %s287, 4
          %s295 = int_to_ptr.vmem [resolvable:$true] %s294
          %297 = dma.hbm_to_vmem [thread:$0]  %s292, 64, %s295, %s284
        $region40: #{tpu_custom_call.1} parent=31 // pred_fallthru
          _
      $region32: #{tpu_custom_call.1} parent=5 // pred_fallthru
        _
      %p298 = scmp.le.s32.totalorder 1, %s22
      %p299 = scmp.lt.s32.totalorder %s22, 3
      %p300 = pnand %p298, %p299
      %p301 = pneg %p300
      // Predicated region
      $region41: #{tpu_custom_call.1} parent=5 // pred_check
        _
      $region42: #{tpu_custom_call.1} parent=5 // pred_check_branch
        %303 = sbr.rel (%p300) target = $region44
      $region43: #{tpu_custom_call.1} parent=5 // pred_region
        %s304 = ssub.s32 %s22, 1
        %s305 = sand.u32 %s49, 1
        %s306 = scalar_lea.sflag [#allocation5], %s305
        %s307 = sand.u32 %s49, 1
        %s308 = smul.addr %s307, 4
        %s309 = scalar_lea.vmem [#allocation4], %s308
        // Predicated region
        $region45: #{tpu_custom_call.1} parent=43 // pred_check
          %p310 = pneg %p62
        $region46: #{tpu_custom_call.1} parent=43 // pred_check_branch
          %312 = sbr.rel (%p310) target = $region48
        $region47: #{tpu_custom_call.1} parent=43 // pred_region
          %313 = dma.done %s306, 64
        $region48: #{tpu_custom_call.1} parent=43 // pred_fallthru
          _
        %s314 = sand.u32 %s27, 1
        %s315 = scalar_lea.sflag [#allocation8], %s314
        %s316 = sand.u32 %s75, 1
        %s317 = smul.addr %s316, 4
        %s318 = scalar_lea.vmem [#allocation7], %s317
        // Predicated region
        $region49: #{tpu_custom_call.1} parent=43 // pred_check
          %p319 = pneg %p88
        $region50: #{tpu_custom_call.1} parent=43 // pred_check_branch
          %321 = sbr.rel (%p319) target = $region52
        $region51: #{tpu_custom_call.1} parent=43 // pred_region
          %322 = dma.done %s315, 64
        $region52: #{tpu_custom_call.1} parent=43 // pred_fallthru
          _
        // Predicated region
        $region53: #{tpu_custom_call.1} parent=43 // pred_check
          %p323 = pneg %p109
        $region54: #{tpu_custom_call.1} parent=43 // pred_check_branch
          %325 = sbr.rel (%p323) target = $region56
        $region55: #{tpu_custom_call.1} parent=43 // pred_region
          %326 = dma.done [#allocation8], 256
        $region56: #{tpu_custom_call.1} parent=43 // pred_fallthru
          _
        // Predicated region
        $region57: #{tpu_custom_call.1} parent=43 // pred_check
          %p327 = pneg %p130
        $region58: #{tpu_custom_call.1} parent=43 // pred_check_branch
          %329 = sbr.rel (%p327) target = $region60
        $region59: #{tpu_custom_call.1} parent=43 // pred_region
          %330 = dma.done [#allocation11], 256
        $region60: #{tpu_custom_call.1} parent=43 // pred_fallthru
          _
        // Predicated region
        $region61: #{tpu_custom_call.1} parent=43 // pred_check
          %p331 = pneg %p151
        $region62: #{tpu_custom_call.1} parent=43 // pred_check_branch
          %333 = sbr.rel (%p331) target = $region64
        $region63: #{tpu_custom_call.1} parent=43 // pred_region
          %334 = dma.done [#allocation11], 256
        $region64: #{tpu_custom_call.1} parent=43 // pred_fallthru
          _
        %s335 = sand.u32 %s49, 1
        %s336 = scalar_lea.sflag [#allocation5], %s335
        %s337 = sand.u32 %s49, 1
        %s338 = smul.addr %s337, 4
        %s339 = scalar_lea.vmem [#allocation4], %s338
        %p340 = pneg %p62
        %p341 = pneg %p59
        %s342 = sand.u32 %s27, 1
        %s343 = scalar_lea.sflag [#allocation8], %s342
        %s344 = sand.u32 %s75, 1
        %s345 = smul.addr %s344, 4
        %s346 = scalar_lea.vmem [#allocation7], %s345
        %p347 = pneg %p88
        %p348 = pneg %p85
        %p349 = pneg %p109
        %p350 = pneg %p106
        %p351 = pneg %p130
        %p352 = pneg %p127
        %p353 = pneg %p151
        %p354 = pneg %p148
        %p355 = pneg %p172
        %p356 = pneg %p169
        %p357 = pneg %p200
        %p358 = pneg %p197
        %s359 = sand.u32 %s187, 1
        %s360 = scalar_lea.sflag [#allocation6], %s359
        %s361 = sand.u32 %s187, 1
        %s362 = smul.addr %s361, 8
        %s363 = scalar_lea.vmem [#allocation13], %s362
        %p365 = scmp.eq.s32.totalorder %s32, 0
        // Predicated region
        $region65: #{tpu_custom_call.1} parent=43 // pred_check
          %p366 = pneg %p365
        $region66: #{tpu_custom_call.1} parent=43 // pred_check_branch
          %368 = sbr.rel (%p366) target = $region68
        $region67: #{tpu_custom_call.1} parent=43 // pred_region
          %v369 = vld [vmem:[%s318] sm:$0xf]
          %v370 = vld [vmem:[#allocation10] sm:$0xf]
          %v371 = vld [vmem:[#allocation10 + $0x4] sm:$0xf]
          %v372 = vld [vmem:[#allocation10 + $0x8] sm:$0xf]
          %v373 = vld [vmem:[#allocation10 + $0xc] sm:$0xf]
          %v378 = vunpack.c.l.b16 %v370
          %v379 = vunpack.c.l.b16 %v371
          %v380 = vunpack.c.l.b16 %v372
          %v381 = vunpack.c.l.b16 %v373
          %v382 = vpack.c.b16 %v379, %v378
          %v383 = vpack.c.b16 %v381, %v380
          %vm386 = vcmask 261120
          %v388 = vsel %vm386, %v369, 0
          %390 = vmatprep.subr.bf16.mxu0 0
          %391 = vmatpush1.bf16.msra.mxu0 %v382
          %392 = vmatprep.subr.bf16.mxu0 0
          %393 = vmatpush1.bf16.msra.mxu0 %v383
          %394 = vmatprep.subr.bf16.mxu0 0
          %395 = vmatpush1.bf16.msra.mxu0 0
          %396 = vmatprep.subr.bf16.mxu0 0
          %397 = vmatpush1.bf16.msra.mxu0 0
          %398 = vmatprep.subr.bf16.mxu0 0
          %399 = vmatpush1.bf16.msra.mxu0 0
          %400 = vmatprep.subr.bf16.mxu0 0
          %401 = vmatpush1.bf16.msra.mxu0 0
          %402 = vmatprep.subr.bf16.mxu0 0
          %403 = vmatpush1.bf16.msra.mxu0 0
          %404 = vmatprep.subr.bf16.mxu0 0
          %405 = vmatpush1.bf16.msra.mxu0 0
          %406 = vmatprep.subr.bf16.mxu0 0
          %407 = vmatpush1.bf16.msra.mxu0 0
          %408 = vmatprep.subr.bf16.mxu0 0
          %409 = vmatpush1.bf16.msra.mxu0 0
          %410 = vmatprep.subr.bf16.mxu0 0
          %411 = vmatpush1.bf16.msra.mxu0 0
          %412 = vmatprep.subr.bf16.mxu0 0
          %413 = vmatpush1.bf16.msra.mxu0 0
          %414 = vmatprep.subr.bf16.mxu0 0
          %415 = vmatpush1.bf16.msra.mxu0 0
          %416 = vmatprep.subr.bf16.mxu0 0
          %417 = vmatpush1.bf16.msra.mxu0 0
          %418 = vmatprep.subr.bf16.mxu0 0
          %419 = vmatpush1.bf16.msra.mxu0 0
          %420 = vmatprep.subr.bf16.mxu0 0
          %421 = vmatpush1.bf16.msra.mxu0 0
          %422 = vmatprep.mubr.bf16.mxu0 0
          %423 = vmatmul.mubr.bf16.gmra.mrb[0].mxu0 %v388
          %v424 = vpop.f32.mrb[0].mxu0
          %v425 = vadd.f32 0.0, %v424
          %v426 = vpop.f32.mrb[0].mxu0
          %v427 = vpop.f32.mrb[0].mxu0
          %v428 = vpop.f32.mrb[0].mxu0
          %429 = vdwg.mxu0
          %v430 = vpack.c.bf16 %v425, %v425
          %vm431 = vcmask 519168
          %432 = vst.msk [vmem:[#allocation2] sm:$0xf] %vm431, %v430
        $region68: #{tpu_custom_call.1} parent=43 // pred_fallthru
          _
        %v433 = vld [vmem:[%s309] sm:$0xf]
        %v434 = vld [vmem:[#allocation9] sm:$0xf]
        %v435 = vld [vmem:[#allocation9 + $0x4] sm:$0xf]
        %v436 = vld [vmem:[#allocation9 + $0x8] sm:$0xf]
        %v437 = vld [vmem:[#allocation9 + $0xc] sm:$0xf]
        %v442 = vunpack.c.l.b16 %v434
        %v443 = vunpack.c.l.b16 %v435
        %v444 = vunpack.c.l.b16 %v436
        %v445 = vunpack.c.l.b16 %v437
        %v446 = vpack.c.b16 %v443, %v442
        %v447 = vpack.c.b16 %v445, %v444
        %vm450 = vcmask 261120
        %v452 = vsel %vm450, %v433, 0
        %454 = vmatprep.subr.bf16.mxu0 0
        %455 = vmatpush1.bf16.msra.mxu0 %v446
        %456 = vmatprep.subr.bf16.mxu0 0
        %457 = vmatpush1.bf16.msra.mxu0 %v447
        %458 = vmatprep.subr.bf16.mxu0 0
        %459 = vmatpush1.bf16.msra.mxu0 0
        %460 = vmatprep.subr.bf16.mxu0 0
        %461 = vmatpush1.bf16.msra.mxu0 0
        %462 = vmatprep.subr.bf16.mxu0 0
        %463 = vmatpush1.bf16.msra.mxu0 0
        %464 = vmatprep.subr.bf16.mxu0 0
        %465 = vmatpush1.bf16.msra.mxu0 0
        %466 = vmatprep.subr.bf16.mxu0 0
        %467 = vmatpush1.bf16.msra.mxu0 0
        %468 = vmatprep.subr.bf16.mxu0 0
        %469 = vmatpush1.bf16.msra.mxu0 0
        %470 = vmatprep.subr.bf16.mxu0 0
        %471 = vmatpush1.bf16.msra.mxu0 0
        %472 = vmatprep.subr.bf16.mxu0 0
        %473 = vmatpush1.bf16.msra.mxu0 0
        %474 = vmatprep.subr.bf16.mxu0 0
        %475 = vmatpush1.bf16.msra.mxu0 0
        %476 = vmatprep.subr.bf16.mxu0 0
        %477 = vmatpush1.bf16.msra.mxu0 0
        %478 = vmatprep.subr.bf16.mxu0 0
        %479 = vmatpush1.bf16.msra.mxu0 0
        %480 = vmatprep.subr.bf16.mxu0 0
        %481 = vmatpush1.bf16.msra.mxu0 0
        %482 = vmatprep.subr.bf16.mxu0 0
        %483 = vmatpush1.bf16.msra.mxu0 0
        %484 = vmatprep.subr.bf16.mxu0 0
        %485 = vmatpush1.bf16.msra.mxu0 0
        %486 = vmatprep.mubr.bf16.mxu0 0
        %487 = vmatmul.mubr.bf16.gmra.mrb[0].mxu0 %v452
        %v488 = vpop.f32.mrb[0].mxu0
        %v489 = vadd.f32 0.0, %v488
        %v490 = vpop.f32.mrb[0].mxu0
        %v491 = vpop.f32.mrb[0].mxu0
        %v492 = vpop.f32.mrb[0].mxu0
        %493 = vdwg.mxu0
        %v494 = vmul.f32 %v489, 0.17677669
        %v495 = vpack.c.bf16 %v494, %v494
        %v496 = vld [vmem:[#allocation2] sm:$0xf]
        %vm497 = vcmask 64512
        %v499 = vsel %vm497, %v495, 0
        %v502 = vsel %vm497, %v496, 0
        %504 = vmatprep.subr.bf16.mxu0 0
        %505 = vmatpush1.bf16.xpose.msra.mxu0 %v502
        %506 = vmatprep.subr.bf16.mxu0 0
        %507 = vmatpush1.bf16.xpose.msra.mxu0 0
        %508 = vmatprep.subr.bf16.mxu0 0
        %509 = vmatpush1.bf16.xpose.msra.mxu0 0
        %510 = vmatprep.subr.bf16.mxu0 0
        %511 = vmatpush1.bf16.xpose.msra.mxu0 0
        %512 = vmatprep.subr.bf16.mxu0 0
        %513 = vmatpush1.bf16.xpose.msra.mxu0 0
        %514 = vmatprep.subr.bf16.mxu0 0
        %515 = vmatpush1.bf16.xpose.msra.mxu0 0
        %516 = vmatprep.subr.bf16.mxu0 0
        %517 = vmatpush1.bf16.xpose.msra.mxu0 0
        %518 = vmatprep.subr.bf16.mxu0 0
        %519 = vmatpush1.bf16.xpose.msra.mxu0 0
        %520 = vmatprep.subr.bf16.mxu0 0
        %521 = vmatpush1.bf16.xpose.msra.mxu0 0
        %522 = vmatprep.subr.bf16.mxu0 0
        %523 = vmatpush1.bf16.xpose.msra.mxu0 0
        %524 = vmatprep.subr.bf16.mxu0 0
        %525 = vmatpush1.bf16.xpose.msra.mxu0 0
        %526 = vmatprep.subr.bf16.mxu0 0
        %527 = vmatpush1.bf16.xpose.msra.mxu0 0
        %528 = vmatprep.subr.bf16.mxu0 0
        %529 = vmatpush1.bf16.xpose.msra.mxu0 0
        %530 = vmatprep.subr.bf16.mxu0 0
        %531 = vmatpush1.bf16.xpose.msra.mxu0 0
        %532 = vmatprep.subr.bf16.mxu0 0
        %533 = vmatpush1.bf16.xpose.msra.mxu0 0
        %534 = vmatprep.subr.bf16.mxu0 0
        %535 = vmatpush1.bf16.xpose.msra.mxu0 0
        %536 = vmatprep.mubr.bf16.mxu0 0
        %537 = vmatmul.mubr.bf16.gmra.mrb[0].mxu0 %v499
        %v538 = vpop.f32.mrb[0].mxu0
        %v539 = vadd.f32 0.0, %v538
        %v540 = vpop.f32.mrb[0].mxu0
        %v541 = vpop.f32.mrb[0].mxu0
        %v542 = vpop.f32.mrb[0].mxu0
        %543 = vdwg.mxu0
        %v544 = vsel %vm497, %v539, -inf
        %545 = vmax.xlane.f32.xlu0 %v544
        %v546 = vpop.xlane.xlu0 %545
        %v547 = vsub.f32 -inf, %v546
        %v548 = vmul.f32 %v547, 1.442695
        %v549 = vpow.pop %v548
        %v550 = vsub.f32 %v539, %v546
        %v551 = vmul.f32 %v550, 1.442695
        %v552 = vpow.pop %v551
        %v553 = vmul.f32 %v549, 0.0
        %v554 = vsel %vm497, %v552, 0.0
        %555 = vadd.xlane.f32.xlu0 %v554
        %v556 = vpop.xlane.xlu0 %555
        %v557 = vadd.f32 %v553, %v556
        %v558 = vpack.c.bf16 %v552, %v552
        %v560 = vunpack.c.l.b16 %v496
        %v561 = vpack.c.b16 %v560, %v560
        %562 = vrot.lane.b32.xlu0 %v561, 96
        %v563 = vpop.permute.xlu0 %562
        %v565 = vsel %vm497, %v558, 0
        %vm567 = vcmask 1043456
        %v569 = vsel %vm567, %v563, 0
        %571 = vmatprep.subr.bf16.mxu0 0
        %572 = vmatpush1.bf16.msra.mxu0 %v569
        %573 = vmatprep.subr.bf16.mxu0 0
        %574 = vmatpush1.bf16.msra.mxu0 0
        %575 = vmatprep.subr.bf16.mxu0 0
        %576 = vmatpush1.bf16.msra.mxu0 0
        %577 = vmatprep.subr.bf16.mxu0 0
        %578 = vmatpush1.bf16.msra.mxu0 0
        %579 = vmatprep.subr.bf16.mxu0 0
        %580 = vmatpush1.bf16.msra.mxu0 0
        %581 = vmatprep.subr.bf16.mxu0 0
        %582 = vmatpush1.bf16.msra.mxu0 0
        %583 = vmatprep.subr.bf16.mxu0 0
        %584 = vmatpush1.bf16.msra.mxu0 0
        %585 = vmatprep.subr.bf16.mxu0 0
        %586 = vmatpush1.bf16.msra.mxu0 0
        %587 = vmatprep.subr.bf16.mxu0 0
        %588 = vmatpush1.bf16.msra.mxu0 0
        %589 = vmatprep.subr.bf16.mxu0 0
        %590 = vmatpush1.bf16.msra.mxu0 0
        %591 = vmatprep.subr.bf16.mxu0 0
        %592 = vmatpush1.bf16.msra.mxu0 0
        %593 = vmatprep.subr.bf16.mxu0 0
        %594 = vmatpush1.bf16.msra.mxu0 0
        %595 = vmatprep.subr.bf16.mxu0 0
        %596 = vmatpush1.bf16.msra.mxu0 0
        %597 = vmatprep.subr.bf16.mxu0 0
        %598 = vmatpush1.bf16.msra.mxu0 0
        %599 = vmatprep.subr.bf16.mxu0 0
        %600 = vmatpush1.bf16.msra.mxu0 0
        %601 = vmatprep.subr.bf16.mxu0 0
        %602 = vmatpush1.bf16.msra.mxu0 0
        %603 = vmatprep.mubr.bf16.mxu0 0
        %604 = vmatmul.mubr.bf16.gmra.mrb[0].mxu0 %v565
        %v605 = vpop.f32.mrb[0].mxu0
        %v606 = vadd.f32 0.0, %v605
        %v607 = vpop.f32.mrb[0].mxu0
        %v608 = vpop.f32.mrb[0].mxu0
        %v609 = vpop.f32.mrb[0].mxu0
        %610 = vdwg.mxu0
        %v611 = vadd.f32 %v553, %v606
        %v612 = vrcp.pop %v557
        %v613 = vmul.f32 %v611, %v612
        %v614 = vpack.c.bf16 %v613, %v613
        %vm615 = vcmask 60416
        %616 = vst.msk [vmem:[#allocation3] sm:$0xf] %vm615, %v614
        %v617 = vld [vmem:[#allocation2] sm:$0xf]
        %619 = vrot.lane.b32.xlu0 %v495, 120
        %v620 = vpop.permute.xlu0 %619
        %v622 = vunpack.c.l.b16 %v617
        %v623 = vpack.c.b16 %v622, %v622
        %624 = vrot.lane.b32.xlu0 %v623, 120
        %v625 = vpop.permute.xlu0 %624
        %v627 = vsel %vm497, %v620, 0
        %v630 = vsel %vm497, %v625, 0
        %632 = vmatprep.subr.bf16.mxu0 0
        %633 = vmatpush1.bf16.xpose.msra.mxu0 %v630
        %634 = vmatprep.subr.bf16.mxu0 0
        %635 = vmatpush1.bf16.xpose.msra.mxu0 0
        %636 = vmatprep.subr.bf16.mxu0 0
        %637 = vmatpush1.bf16.xpose.msra.mxu0 0
        %638 = vmatprep.subr.bf16.mxu0 0
        %639 = vmatpush1.bf16.xpose.msra.mxu0 0
        %640 = vmatprep.subr.bf16.mxu0 0
        %641 = vmatpush1.bf16.xpose.msra.mxu0 0
        %642 = vmatprep.subr.bf16.mxu0 0
        %643 = vmatpush1.bf16.xpose.msra.mxu0 0
        %644 = vmatprep.subr.bf16.mxu0 0
        %645 = vmatpush1.bf16.xpose.msra.mxu0 0
        %646 = vmatprep.subr.bf16.mxu0 0
        %647 = vmatpush1.bf16.xpose.msra.mxu0 0
        %648 = vmatprep.subr.bf16.mxu0 0
        %649 = vmatpush1.bf16.xpose.msra.mxu0 0
        %650 = vmatprep.subr.bf16.mxu0 0
        %651 = vmatpush1.bf16.xpose.msra.mxu0 0
        %652 = vmatprep.subr.bf16.mxu0 0
        %653 = vmatpush1.bf16.xpose.msra.mxu0 0
        %654 = vmatprep.subr.bf16.mxu0 0
        %655 = vmatpush1.bf16.xpose.msra.mxu0 0
        %656 = vmatprep.subr.bf16.mxu0 0
        %657 = vmatpush1.bf16.xpose.msra.mxu0 0
        %658 = vmatprep.subr.bf16.mxu0 0
        %659 = vmatpush1.bf16.xpose.msra.mxu0 0
        %660 = vmatprep.subr.bf16.mxu0 0
        %661 = vmatpush1.bf16.xpose.msra.mxu0 0
        %662 = vmatprep.subr.bf16.mxu0 0
        %663 = vmatpush1.bf16.xpose.msra.mxu0 0
        %664 = vmatprep.mubr.bf16.mxu0 0
        %665 = vmatmul.mubr.bf16.gmra.mrb[0].mxu0 %v627
        %v666 = vpop.f32.mrb[0].mxu0
        %v667 = vadd.f32 0.0, %v666
        %v668 = vpop.f32.mrb[0].mxu0
        %v669 = vpop.f32.mrb[0].mxu0
        %v670 = vpop.f32.mrb[0].mxu0
        %671 = vdwg.mxu0
        %v672 = vsel %vm497, %v667, -inf
        %673 = vmax.xlane.f32.xlu0 %v672
        %v674 = vpop.xlane.xlu0 %673
        %v675 = vsub.f32 -inf, %v674
        %v676 = vmul.f32 %v675, 1.442695
        %v677 = vpow.pop %v676
        %v678 = vsub.f32 %v667, %v674
        %v679 = vmul.f32 %v678, 1.442695
        %v680 = vpow.pop %v679
        %v681 = vmul.f32 %v677, 0.0
        %v682 = vsel %vm497, %v680, 0.0
        %683 = vadd.xlane.f32.xlu0 %v682
        %v684 = vpop.xlane.xlu0 %683
        %v685 = vadd.f32 %v681, %v684
        %v686 = vpack.c.bf16 %v680, %v680
        %687 = vrot.lane.b32.xlu0 %v623, 88
        %v688 = vpop.permute.xlu0 %687
        %v690 = vsel %vm497, %v686, 0
        %v693 = vsel %vm567, %v688, 0
        %695 = vmatprep.subr.bf16.mxu0 0
        %696 = vmatpush1.bf16.msra.mxu0 %v693
        %697 = vmatprep.subr.bf16.mxu0 0
        %698 = vmatpush1.bf16.msra.mxu0 0
        %699 = vmatprep.subr.bf16.mxu0 0
        %700 = vmatpush1.bf16.msra.mxu0 0
        %701 = vmatprep.subr.bf16.mxu0 0
        %702 = vmatpush1.bf16.msra.mxu0 0
        %703 = vmatprep.subr.bf16.mxu0 0
        %704 = vmatpush1.bf16.msra.mxu0 0
        %705 = vmatprep.subr.bf16.mxu0 0
        %706 = vmatpush1.bf16.msra.mxu0 0
        %707 = vmatprep.subr.bf16.mxu0 0
        %708 = vmatpush1.bf16.msra.mxu0 0
        %709 = vmatprep.subr.bf16.mxu0 0
        %710 = vmatpush1.bf16.msra.mxu0 0
        %711 = vmatprep.subr.bf16.mxu0 0
        %712 = vmatpush1.bf16.msra.mxu0 0
        %713 = vmatprep.subr.bf16.mxu0 0
        %714 = vmatpush1.bf16.msra.mxu0 0
        %715 = vmatprep.subr.bf16.mxu0 0
        %716 = vmatpush1.bf16.msra.mxu0 0
        %717 = vmatprep.subr.bf16.mxu0 0
        %718 = vmatpush1.bf16.msra.mxu0 0
        %719 = vmatprep.subr.bf16.mxu0 0
        %720 = vmatpush1.bf16.msra.mxu0 0
        %721 = vmatprep.subr.bf16.mxu0 0
        %722 = vmatpush1.bf16.msra.mxu0 0
        %723 = vmatprep.subr.bf16.mxu0 0
        %724 = vmatpush1.bf16.msra.mxu0 0
        %725 = vmatprep.subr.bf16.mxu0 0
        %726 = vmatpush1.bf16.msra.mxu0 0
        %727 = vmatprep.mubr.bf16.mxu0 0
        %728 = vmatmul.mubr.bf16.gmra.mrb[0].mxu0 %v690
        %v729 = vpop.f32.mrb[0].mxu0
        %v730 = vadd.f32 0.0, %v729
        %v731 = vpop.f32.mrb[0].mxu0
        %v732 = vpop.f32.mrb[0].mxu0
        %v733 = vpop.f32.mrb[0].mxu0
        %734 = vdwg.mxu0
        %v735 = vadd.f32 %v681, %v730
        %v736 = vrcp.pop %v685
        %v737 = vmul.f32 %v735, %v736
        %v738 = vpack.c.bf16 %v737, %v737
        %v740 = vunpack.c.l.b16 %v738
        %v741 = vpack.c.b16 %v740, %v740
        %742 = vrot.lane.b32.xlu0 %v741, 8
        %v743 = vpop.permute.xlu0 %742
        %vm745 = vcmask 126016
        %746 = vst.msk [vmem:[#allocation3] sm:$0xf] %vm745, %v743
        %v747 = vld [vmem:[#allocation2] sm:$0xf]
        %748 = vrot.lane.b32.xlu0 %v495, 112
        %v749 = vpop.permute.xlu0 %748
        %v751 = vunpack.c.l.b16 %v747
        %v752 = vpack.c.b16 %v751, %v751
        %753 = vrot.lane.b32.xlu0 %v752, 112
        %v754 = vpop.permute.xlu0 %753
        %v756 = vsel %vm497, %v749, 0
        %v759 = vsel %vm497, %v754, 0
        %761 = vmatprep.subr.bf16.mxu0 0
        %762 = vmatpush1.bf16.xpose.msra.mxu0 %v759
        %763 = vmatprep.subr.bf16.mxu0 0
        %764 = vmatpush1.bf16.xpose.msra.mxu0 0
        %765 = vmatprep.subr.bf16.mxu0 0
        %766 = vmatpush1.bf16.xpose.msra.mxu0 0
        %767 = vmatprep.subr.bf16.mxu0 0
        %768 = vmatpush1.bf16.xpose.msra.mxu0 0
        %769 = vmatprep.subr.bf16.mxu0 0
        %770 = vmatpush1.bf16.xpose.msra.mxu0 0
        %771 = vmatprep.subr.bf16.mxu0 0
        %772 = vmatpush1.bf16.xpose.msra.mxu0 0
        %773 = vmatprep.subr.bf16.mxu0 0
        %774 = vmatpush1.bf16.xpose.msra.mxu0 0
        %775 = vmatprep.subr.bf16.mxu0 0
        %776 = vmatpush1.bf16.xpose.msra.mxu0 0
        %777 = vmatprep.subr.bf16.mxu0 0
        %778 = vmatpush1.bf16.xpose.msra.mxu0 0
        %779 = vmatprep.subr.bf16.mxu0 0
        %780 = vmatpush1.bf16.xpose.msra.mxu0 0
        %781 = vmatprep.subr.bf16.mxu0 0
        %782 = vmatpush1.bf16.xpose.msra.mxu0 0
        %783 = vmatprep.subr.bf16.mxu0 0
        %784 = vmatpush1.bf16.xpose.msra.mxu0 0
        %785 = vmatprep.subr.bf16.mxu0 0
        %786 = vmatpush1.bf16.xpose.msra.mxu0 0
        %787 = vmatprep.subr.bf16.mxu0 0
        %788 = vmatpush1.bf16.xpose.msra.mxu0 0
        %789 = vmatprep.subr.bf16.mxu0 0
        %790 = vmatpush1.bf16.xpose.msra.mxu0 0
        %791 = vmatprep.subr.bf16.mxu0 0
        %792 = vmatpush1.bf16.xpose.msra.mxu0 0
        %793 = vmatprep.mubr.bf16.mxu0 0
        %794 = vmatmul.mubr.bf16.gmra.mrb[0].mxu0 %v756
        %v795 = vpop.f32.mrb[0].mxu0
        %v796 = vadd.f32 0.0, %v795
        %v797 = vpop.f32.mrb[0].mxu0
        %v798 = vpop.f32.mrb[0].mxu0
        %v799 = vpop.f32.mrb[0].mxu0
        %800 = vdwg.mxu0
        %v801 = vsel %vm497, %v796, -inf
        %802 = vmax.xlane.f32.xlu0 %v801
        %v803 = vpop.xlane.xlu0 %802
        %v804 = vsub.f32 -inf, %v803
        %v805 = vmul.f32 %v804, 1.442695
        %v806 = vpow.pop %v805
        %v807 = vsub.f32 %v796, %v803
        %v808 = vmul.f32 %v807, 1.442695
        %v809 = vpow.pop %v808
        %v810 = vmul.f32 %v806, 0.0
        %v811 = vsel %vm497, %v809, 0.0
        %812 = vadd.xlane.f32.xlu0 %v811
        %v813 = vpop.xlane.xlu0 %812
        %v814 = vadd.f32 %v810, %v813
        %v815 = vpack.c.bf16 %v809, %v809
        %816 = vrot.lane.b32.xlu0 %v752, 80
        %v817 = vpop.permute.xlu0 %816
        %v819 = vsel %vm497, %v815, 0
        %v822 = vsel %vm567, %v817, 0
        %824 = vmatprep.subr.bf16.mxu0 0
        %825 = vmatpush1.bf16.msra.mxu0 %v822
        %826 = vmatprep.subr.bf16.mxu0 0
        %827 = vmatpush1.bf16.msra.mxu0 0
        %828 = vmatprep.subr.bf16.mxu0 0
        %829 = vmatpush1.bf16.msra.mxu0 0
        %830 = vmatprep.subr.bf16.mxu0 0
        %831 = vmatpush1.bf16.msra.mxu0 0
        %832 = vmatprep.subr.bf16.mxu0 0
        %833 = vmatpush1.bf16.msra.mxu0 0
        %834 = vmatprep.subr.bf16.mxu0 0
        %835 = vmatpush1.bf16.msra.mxu0 0
        %836 = vmatprep.subr.bf16.mxu0 0
        %837 = vmatpush1.bf16.msra.mxu0 0
        %838 = vmatprep.subr.bf16.mxu0 0
        %839 = vmatpush1.bf16.msra.mxu0 0
        %840 = vmatprep.subr.bf16.mxu0 0
        %841 = vmatpush1.bf16.msra.mxu0 0
        %842 = vmatprep.subr.bf16.mxu0 0
        %843 = vmatpush1.bf16.msra.mxu0 0
        %844 = vmatprep.subr.bf16.mxu0 0
        %845 = vmatpush1.bf16.msra.mxu0 0
        %846 = vmatprep.subr.bf16.mxu0 0
        %847 = vmatpush1.bf16.msra.mxu0 0
        %848 = vmatprep.subr.bf16.mxu0 0
        %849 = vmatpush1.bf16.msra.mxu0 0
        %850 = vmatprep.subr.bf16.mxu0 0
        %851 = vmatpush1.bf16.msra.mxu0 0
        %852 = vmatprep.subr.bf16.mxu0 0
        %853 = vmatpush1.bf16.msra.mxu0 0
        %854 = vmatprep.subr.bf16.mxu0 0
        %855 = vmatpush1.bf16.msra.mxu0 0
        %856 = vmatprep.mubr.bf16.mxu0 0
        %857 = vmatmul.mubr.bf16.gmra.mrb[0].mxu0 %v819
        %v858 = vpop.f32.mrb[0].mxu0
        %v859 = vadd.f32 0.0, %v858
        %v860 = vpop.f32.mrb[0].mxu0
        %v861 = vpop.f32.mrb[0].mxu0
        %v862 = vpop.f32.mrb[0].mxu0
        %863 = vdwg.mxu0
        %v864 = vadd.f32 %v810, %v859
        %v865 = vrcp.pop %v814
        %v866 = vmul.f32 %v864, %v865
        %v867 = vpack.c.bf16 %v866, %v866
        %v869 = vunpack.c.l.b16 %v867
        %v870 = vpack.c.b16 %v869, %v869
        %871 = vrot.lane.b32.xlu0 %v870, 16
        %v872 = vpop.permute.xlu0 %871
        %vm874 = vcmask 191616
        %875 = vst.msk [vmem:[#allocation3] sm:$0xf] %vm874, %v872
        %v876 = vld [vmem:[#allocation2] sm:$0xf]
        %877 = vrot.lane.b32.xlu0 %v495, 104
        %v878 = vpop.permute.xlu0 %877
        %v880 = vunpack.c.l.b16 %v876
        %v881 = vpack.c.b16 %v880, %v880
        %882 = vrot.lane.b32.xlu0 %v881, 104
        %v883 = vpop.permute.xlu0 %882
        %v885 = vsel %vm497, %v878, 0
        %v888 = vsel %vm497, %v883, 0
        %890 = vmatprep.subr.bf16.mxu0 0
        %891 = vmatpush1.bf16.xpose.msra.mxu0 %v888
        %892 = vmatprep.subr.bf16.mxu0 0
        %893 = vmatpush1.bf16.xpose.msra.mxu0 0
        %894 = vmatprep.subr.bf16.mxu0 0
        %895 = vmatpush1.bf16.xpose.msra.mxu0 0
        %896 = vmatprep.subr.bf16.mxu0 0
        %897 = vmatpush1.bf16.xpose.msra.mxu0 0
        %898 = vmatprep.subr.bf16.mxu0 0
        %899 = vmatpush1.bf16.xpose.msra.mxu0 0
        %900 = vmatprep.subr.bf16.mxu0 0
        %901 = vmatpush1.bf16.xpose.msra.mxu0 0
        %902 = vmatprep.subr.bf16.mxu0 0
        %903 = vmatpush1.bf16.xpose.msra.mxu0 0
        %904 = vmatprep.subr.bf16.mxu0 0
        %905 = vmatpush1.bf16.xpose.msra.mxu0 0
        %906 = vmatprep.subr.bf16.mxu0 0
        %907 = vmatpush1.bf16.xpose.msra.mxu0 0
        %908 = vmatprep.subr.bf16.mxu0 0
        %909 = vmatpush1.bf16.xpose.msra.mxu0 0
        %910 = vmatprep.subr.bf16.mxu0 0
        %911 = vmatpush1.bf16.xpose.msra.mxu0 0
        %912 = vmatprep.subr.bf16.mxu0 0
        %913 = vmatpush1.bf16.xpose.msra.mxu0 0
        %914 = vmatprep.subr.bf16.mxu0 0
        %915 = vmatpush1.bf16.xpose.msra.mxu0 0
        %916 = vmatprep.subr.bf16.mxu0 0
        %917 = vmatpush1.bf16.xpose.msra.mxu0 0
        %918 = vmatprep.subr.bf16.mxu0 0
        %919 = vmatpush1.bf16.xpose.msra.mxu0 0
        %920 = vmatprep.subr.bf16.mxu0 0
        %921 = vmatpush1.bf16.xpose.msra.mxu0 0
        %922 = vmatprep.mubr.bf16.mxu0 0
        %923 = vmatmul.mubr.bf16.gmra.mrb[0].mxu0 %v885
        %v924 = vpop.f32.mrb[0].mxu0
        %v925 = vadd.f32 0.0, %v924
        %v926 = vpop.f32.mrb[0].mxu0
        %v927 = vpop.f32.mrb[0].mxu0
        %v928 = vpop.f32.mrb[0].mxu0
        %929 = vdwg.mxu0
        %v930 = vsel %vm497, %v925, -inf
        %931 = vmax.xlane.f32.xlu0 %v930
        %v932 = vpop.xlane.xlu0 %931
        %v933 = vsub.f32 -inf, %v932
        %v934 = vmul.f32 %v933, 1.442695
        %v935 = vpow.pop %v934
        %v936 = vsub.f32 %v925, %v932
        %v937 = vmul.f32 %v936, 1.442695
        %v938 = vpow.pop %v937
        %v939 = vmul.f32 %v935, 0.0
        %v940 = vsel %vm497, %v938, 0.0
        %941 = vadd.xlane.f32.xlu0 %v940
        %v942 = vpop.xlane.xlu0 %941
        %v943 = vadd.f32 %v939, %v942
        %v944 = vpack.c.bf16 %v938, %v938
        %945 = vrot.lane.b32.xlu0 %v881, 72
        %v946 = vpop.permute.xlu0 %945
        %v948 = vsel %vm497, %v944, 0
        %v951 = vsel %vm567, %v946, 0
        %953 = vmatprep.subr.bf16.mxu0 0
        %954 = vmatpush1.bf16.msra.mxu0 %v951
        %955 = vmatprep.subr.bf16.mxu0 0
        %956 = vmatpush1.bf16.msra.mxu0 0
        %957 = vmatprep.subr.bf16.mxu0 0
        %958 = vmatpush1.bf16.msra.mxu0 0
        %959 = vmatprep.subr.bf16.mxu0 0
        %960 = vmatpush1.bf16.msra.mxu0 0
        %961 = vmatprep.subr.bf16.mxu0 0
        %962 = vmatpush1.bf16.msra.mxu0 0
        %963 = vmatprep.subr.bf16.mxu0 0
        %964 = vmatpush1.bf16.msra.mxu0 0
        %965 = vmatprep.subr.bf16.mxu0 0
        %966 = vmatpush1.bf16.msra.mxu0 0
        %967 = vmatprep.subr.bf16.mxu0 0
        %968 = vmatpush1.bf16.msra.mxu0 0
        %969 = vmatprep.subr.bf16.mxu0 0
        %970 = vmatpush1.bf16.msra.mxu0 0
        %971 = vmatprep.subr.bf16.mxu0 0
        %972 = vmatpush1.bf16.msra.mxu0 0
        %973 = vmatprep.subr.bf16.mxu0 0
        %974 = vmatpush1.bf16.msra.mxu0 0
        %975 = vmatprep.subr.bf16.mxu0 0
        %976 = vmatpush1.bf16.msra.mxu0 0
        %977 = vmatprep.subr.bf16.mxu0 0
        %978 = vmatpush1.bf16.msra.mxu0 0
        %979 = vmatprep.subr.bf16.mxu0 0
        %980 = vmatpush1.bf16.msra.mxu0 0
        %981 = vmatprep.subr.bf16.mxu0 0
        %982 = vmatpush1.bf16.msra.mxu0 0
        %983 = vmatprep.subr.bf16.mxu0 0
        %984 = vmatpush1.bf16.msra.mxu0 0
        %985 = vmatprep.mubr.bf16.mxu0 0
        %986 = vmatmul.mubr.bf16.gmra.mrb[0].mxu0 %v948
        %v987 = vpop.f32.mrb[0].mxu0
        %v988 = vadd.f32 0.0, %v987
        %v989 = vpop.f32.mrb[0].mxu0
        %v990 = vpop.f32.mrb[0].mxu0
        %v991 = vpop.f32.mrb[0].mxu0
        %992 = vdwg.mxu0
        %v993 = vadd.f32 %v939, %v988
        %v994 = vrcp.pop %v943
        %v995 = vmul.f32 %v993, %v994
        %v996 = vpack.c.bf16 %v995, %v995
        %v998 = vunpack.c.l.b16 %v996
        %v999 = vpack.c.b16 %v998, %v998
        %1000 = vrot.lane.b32.xlu0 %v999, 24
        %v1001 = vpop.permute.xlu0 %1000
        %vm1003 = vcmask 257216
        %1004 = vst.msk [vmem:[#allocation3] sm:$0xf] %vm1003, %v1001
        %v1005 = vld [vmem:[#allocation3] sm:$0xf]
        %v1006 = vld [vmem:[#allocation12] sm:$0xf]
        %v1007 = vld [vmem:[#allocation12 + $0x4] sm:$0xf]
        %v1008 = vld [vmem:[#allocation12 + $0x8] sm:$0xf]
        %v1009 = vld [vmem:[#allocation12 + $0xc] sm:$0xf]
        %v1010 = vld [vmem:[%s5] sm:$0x1]
        %v1012 = vlaneseq
        %v1013 = vshrl.u32 %v1012, 7
        %v1014 = vsub.s32 0, %v1013
        %v1015 = vrot.slane %v1010, %v1014
        %v1021 = vunpack.c.l.b16 %v1006
        %v1022 = vunpack.c.l.b16 %v1007
        %v1023 = vunpack.c.l.b16 %v1008
        %v1024 = vunpack.c.l.b16 %v1009
        %v1025 = vpack.c.b16 %v1022, %v1021
        %v1026 = vpack.c.b16 %v1024, %v1023
        %v1030 = vsel %vm450, %v1005, 0
        %1032 = vmatprep.subr.bf16.mxu0 0
        %1033 = vmatpush1.bf16.msra.mxu0 %v1025
        %1034 = vmatprep.subr.bf16.mxu0 0
        %1035 = vmatpush1.bf16.msra.mxu0 %v1026
        %1036 = vmatprep.subr.bf16.mxu0 0
        %1037 = vmatpush1.bf16.msra.mxu0 0
        %1038 = vmatprep.subr.bf16.mxu0 0
        %1039 = vmatpush1.bf16.msra.mxu0 0
        %1040 = vmatprep.subr.bf16.mxu0 0
        %1041 = vmatpush1.bf16.msra.mxu0 0
        %1042 = vmatprep.subr.bf16.mxu0 0
        %1043 = vmatpush1.bf16.msra.mxu0 0
        %1044 = vmatprep.subr.bf16.mxu0 0
        %1045 = vmatpush1.bf16.msra.mxu0 0
        %1046 = vmatprep.subr.bf16.mxu0 0
        %1047 = vmatpush1.bf16.msra.mxu0 0
        %1048 = vmatprep.subr.bf16.mxu0 0
        %1049 = vmatpush1.bf16.msra.mxu0 0
        %1050 = vmatprep.subr.bf16.mxu0 0
        %1051 = vmatpush1.bf16.msra.mxu0 0
        %1052 = vmatprep.subr.bf16.mxu0 0
        %1053 = vmatpush1.bf16.msra.mxu0 0
        %1054 = vmatprep.subr.bf16.mxu0 0
        %1055 = vmatpush1.bf16.msra.mxu0 0
        %1056 = vmatprep.subr.bf16.mxu0 0
        %1057 = vmatpush1.bf16.msra.mxu0 0
        %1058 = vmatprep.subr.bf16.mxu0 0
        %1059 = vmatpush1.bf16.msra.mxu0 0
        %1060 = vmatprep.subr.bf16.mxu0 0
        %1061 = vmatpush1.bf16.msra.mxu0 0
        %1062 = vmatprep.subr.bf16.mxu0 0
        %1063 = vmatpush1.bf16.msra.mxu0 0
        %1064 = vmatprep.mubr.bf16.mxu0 0
        %1065 = vmatmul.mubr.bf16.gmra.mrb[0].mxu0 %v1030
        %v1066 = vpop.f32.mrb[0].mxu0
        %v1067 = vadd.f32 %v1015, %v1066
        %v1068 = vpop.f32.mrb[0].mxu0
        %v1069 = vpop.f32.mrb[0].mxu0
        %v1070 = vpop.f32.mrb[0].mxu0
        %1071 = vdwg.mxu0
        %1072 = vst.msk [vmem:[%s363] sm:$0xff] %vm450, %v1067
        %s1073 = sand.u32 %s187, 1
        %s1074 = scalar_lea.sflag [#allocation6], %s1073
        %s1075 = sand.u32 %s187, 1
        %s1076 = smul.addr %s1075, 8
        %s1077 = scalar_lea.vmem [#allocation13], %s1076
        // Predicated region
        $region69: #{tpu_custom_call.1} parent=43 // pred_check
          %p1078 = pneg %p197
        $region70: #{tpu_custom_call.1} parent=43 // pred_check_branch
          %1080 = sbr.rel (%p1078) target = $region72
        $region71: #{tpu_custom_call.1} parent=43 // pred_region
          %s1082 = ssub.s32 128, 128
          %1083 = vsyncadd %s1074, %s1082
          %s1084 = sadd.s32 %s32, %s31
          %s1085 = smul.addr %s1084, 128
          %s1086 = scalar_lea.hbm %s6, %s1085
          %s1088 = sshll.u32 %s1077, 4
          %s1089 = int_to_ptr.vmem [resolvable:$true] %s1088
          %1091 = dma.vmem_to_hbm [thread:$0]  %s1089, 128, %s1086, %s1074
        $region72: #{tpu_custom_call.1} parent=43 // pred_fallthru
          _
      $region44: #{tpu_custom_call.1} parent=5 // pred_fallthru
        _
      %p1092 = scmp.le.s32.totalorder 2, %s22
      // Predicated region
      $region73: #{tpu_custom_call.1} parent=5 // pred_check
        %p1093 = pneg %p1092
      $region74: #{tpu_custom_call.1} parent=5 // pred_check_branch
        %1095 = sbr.rel (%p1093) target = $region76
      $region75: #{tpu_custom_call.1} parent=5 // pred_region
        %s1096 = ssub.s32 %s22, 2
        // Predicated region
        $region77: #{tpu_custom_call.1} parent=75 // pred_check
          %p1097 = pneg %p203
        $region78: #{tpu_custom_call.1} parent=75 // pred_check_branch
          %1099 = sbr.rel (%p1097) target = $region80
        $region79: #{tpu_custom_call.1} parent=75 // pred_region
          %s1100 = sand.u32 %s188, 1
          %s1101 = scalar_lea.sflag [#allocation6], %s1100
          %s1102 = sand.u32 %s188, 1
          %s1103 = smul.addr %s1102, 8
          %s1104 = scalar_lea.vmem [#allocation13], %s1103
          %1105 = dma.done %s1101, 128
        $region80: #{tpu_custom_call.1} parent=75 // pred_fallthru
          _
      $region76: #{tpu_custom_call.1} parent=5 // pred_fallthru
        _
    $region6: #{tpu_custom_call.1} parent=1 // loop_footer
      %s26 = sadd.s32 1, %s22
    $region7: #{tpu_custom_call.1} parent=1 // loop_footer_branch
      %21 = sbr.rel target = $region3
    $region8: #{tpu_custom_call.1} parent=1 // loop_exit
      _
    %1106 = vsyncpa [#allocation5], 1
    %s1107 = scalar_lea.sflag [#allocation5], 1
    %1108 = vsyncpa %s1107, 1
    %1109 = vsyncpa [#allocation8], 1
    %s1110 = scalar_lea.sflag [#allocation8], 1
    %1111 = vsyncpa %s1110, 1
    %1112 = vsyncpa [#allocation11], 1
    %1113 = vsyncpa [#allocation6], 1
    %s1114 = scalar_lea.sflag [#allocation6], 1
    %1115 = vsyncpa %s1114, 1

</llo_original>
